<compile_context>
chip_gen: v7x
topology: tpu7x:2x2x1
jax: 0.10.0
libtpu: 0.0.40
codegen_flags: <defaults>
</compile_context>

<pallas_src>
import numpy as np
import jax
import jax.numpy as jnp
from jax import lax
from jax.experimental import pallas as pl
from jax.experimental.pallas import tpu as pltpu

MASK_K = 4          # args.mask_k
SEQ = 8
HIDDEN = 32
HEADS = 2
HEAD_DIM = HIDDEN // HEADS
MLP = 64
VOCAB = 64
LAYERS = 2
MAX_POS = 16
EPS = 1e-5
NEG_INF = float(jnp.finfo(jnp.float32).min)

# ---------------- packed slab layout (all row starts are multiples of 8) ----------------
# mats32: trailing dim = HIDDEN (32)
TOK_OFF = 0                                        # [VOCAB, 32]  token embedding table
POS_OFF = VOCAB                                    # [SEQ, 32]    position embeddings
LAYER_MAT_OFF = VOCAB + SEQ                        # 72
LAYER_MAT_ROWS = 4 * HIDDEN + MLP                  # q,k,v,out (32 each) + w2 (64) = 192
QW, KW, VW, OW, W2 = 0, HIDDEN, 2 * HIDDEN, 3 * HIDDEN, 4 * HIDDEN
VEC_OFF = LAYER_MAT_OFF + LAYERS * LAYER_MAT_ROWS  # 456
VEC_ROWS = 8                                       # per-layer vector block (5 used, 3 pad)
BQ, BK, BV, BO, B2 = 0, 1, 2, 3, 4
FIN_OFF = VEC_OFF + LAYERS * VEC_ROWS              # 472
FING, FINB, WROW = 0, 1, 2                         # final LN gamma/beta, weight row (lanes 0..K-1)
TOTAL32 = FIN_OFF + 8                              # 480
# mats64: trailing dim = MLP (64)
M64_LAYER_ROWS = 40                                # fc1' (32 rows) + fc1 bias' (1 row) + pad
M64_W1, M64_B1 = 0, HIDDEN
TOTAL64 = LAYERS * M64_LAYER_ROWS                  # 80


def _normalize(x):
    mu = jnp.mean(x, axis=-1, keepdims=True)
    var = jnp.mean(jnp.square(x - mu), axis=-1, keepdims=True)
    return (x - mu) * lax.rsqrt(var + EPS)


def _layer_norm(x, g, b):
    return _normalize(x) * g + b


# ----------------------------------------------------------------------------------------
# Fused kernel: gather + mix + scatter + 2 encoder layers + final LN + pooled select
# ----------------------------------------------------------------------------------------
def fused_text_encoder_kernel(ids_ref,            # SMEM  (SEQ+1,) int32: ids[0:SEQ], [SEQ]=ph id
                              cand_ref,           # VMEM  [MASK_K, HIDDEN] f32
                              m32_ref,            # VMEM  [TOTAL32, HIDDEN] f32 parameter slab
                              m64_ref,            # VMEM  [TOTAL64, MLP] f32 parameter slab
                              out_ref,            # VMEM  [SEQ, HIDDEN] f32
                              pooled_ref):        # VMEM  [1, HIDDEN] f32
    # ---- scalar index computations (placeholder first-occurrence, argmax for pooling) ----
    ph_id = ids_ref[SEQ]
    ph = jnp.int32(-1)
    best_v = ids_ref[0]
    best_i = jnp.int32(0)
    for i in range(SEQ):                                   # static unroll, scalar-unit ops
        v = ids_ref[i]
        ph = jnp.where(jnp.logical_and(v == ph_id, ph < 0), jnp.int32(i), ph)
        if i > 0:
            take = v > best_v
            best_v = jnp.where(take, v, best_v)
            best_i = jnp.where(take, jnp.int32(i), best_i)

    # ---- token-embedding gather as a one-hot matmul (ids built from SMEM scalars) ----
    row1 = lax.broadcasted_iota(jnp.int32, (SEQ, 1), 0)
    ids_vec = jnp.zeros((SEQ, 1), jnp.int32)
    for i in range(SEQ):
        ids_vec = jnp.where(row1 == i, ids_ref[i], ids_vec)
    vocab_ids = lax.broadcasted_iota(jnp.int32, (SEQ, VOCAB), 1)
    one_hot = (ids_vec == vocab_ids).astype(jnp.float32)
    x_tok = jnp.dot(one_hot, m32_ref[TOK_OFF:TOK_OFF + VOCAB, :],
                    preferred_element_type=jnp.float32)                      # [SEQ, D]

    # ---- textual-inversion mix (weight^T @ candidate matrix) and placeholder scatter ----
    w_row = m32_ref[FIN_OFF + WROW:FIN_OFF + WROW + 1, 0:MASK_K]             # [1, K]
    mixed = jnp.dot(w_row, cand_ref[...], preferred_element_type=jnp.float32)  # [1, D]
    row_ids = lax.broadcasted_iota(jnp.int32, (SEQ, HIDDEN), 0)
    x = jnp.where(row_ids == ph, mixed, x_tok) + m32_ref[POS_OFF:POS_OFF + SEQ, :]

    # ---- causal mask (CLIP style: finfo.min strictly above the diagonal) ----
    r = lax.broadcasted_iota(jnp.int32, (SEQ, SEQ), 0)
    c = lax.broadcasted_iota(jnp.int32, (SEQ, SEQ), 1)
    causal = jnp.where(c > r, NEG_INF, 0.0).astype(jnp.float32)

    for l in range(LAYERS):                                # static unroll (LAYERS = 2)
        mb = LAYER_MAT_OFF + l * LAYER_MAT_ROWS
        vb = VEC_OFF + l * VEC_ROWS
        fb = l * M64_LAYER_ROWS

        # --- self-attention (pre-LN; LN affine + q-scale folded into weights/biases) ---
        z = _normalize(x)
        q = jnp.dot(z, m32_ref[mb + QW:mb + QW + HIDDEN, :],
                    preferred_element_type=jnp.float32) + m32_ref[vb + BQ:vb + BQ + 1, :]
        k = jnp.dot(z, m32_ref[mb + KW:mb + KW + HIDDEN, :],
                    preferred_element_type=jnp.float32) + m32_ref[vb + BK:vb + BK + 1, :]
        v = jnp.dot(z, m32_ref[mb + VW:mb + VW + HIDDEN, :],
                    preferred_element_type=jnp.float32) + m32_ref[vb + BV:vb + BV + 1, :]

        attn = jnp.zeros((SEQ, HIDDEN), jnp.float32)
        for hd in range(HEADS):                            # static head loop
            sl = slice(hd * HEAD_DIM, (hd + 1) * HEAD_DIM)
            # contract on dim 1 of both operands (no materialized transpose of k)
            s = lax.dot_general(q[:, sl], k[:, sl], (((1,), (1,)), ((), ())),
                                preferred_element_type=jnp.float32) + causal
            s = s - jnp.max(s, axis=-1, keepdims=True)
            p = jnp.exp(s)
            p = p / jnp.sum(p, axis=-1, keepdims=True)
            ho = jnp.dot(p, v[:, sl], preferred_element_type=jnp.float32)    # [SEQ, HEAD_DIM]
            # concat-free output projection: attn @ Wo == Σ_h head_h @ Wo[head rows]
            attn = attn + jnp.dot(
                ho, m32_ref[mb + OW + hd * HEAD_DIM:mb + OW + (hd + 1) * HEAD_DIM, :],
                preferred_element_type=jnp.float32)
        x = x + attn + m32_ref[vb + BO:vb + BO + 1, :]

        # --- MLP (quick_gelu; LN2 affine folded into fc1 weights/bias) ---
        z2 = _normalize(x)
        f = jnp.dot(z2, m64_ref[fb + M64_W1:fb + M64_W1 + HIDDEN, :],
                    preferred_element_type=jnp.float32) + m64_ref[fb + M64_B1:fb + M64_B1 + 1, :]
        f = f * jax.nn.sigmoid(1.702 * f)
        x = x + jnp.dot(f, m32_ref[mb + W2:mb + W2 + MLP, :],
                        preferred_element_type=jnp.float32) + m32_ref[vb + B2:vb + B2 + 1, :]

    # ---- final layer norm + pooled-row select ----
    out = _normalize(x) * m32_ref[FIN_OFF + FING:FIN_OFF + FING + 1, :] \
        + m32_ref[FIN_OFF + FINB:FIN_OFF + FINB + 1, :]
    out_ref[...] = out
    pooled_ref[...] = jnp.sum(jnp.where(row_ids == best_i, out, 0.0),
                              axis=0, keepdims=True)


def fused_text_encoder(ids_plus, cand, mats32, mats64):
    vmem = pl.BlockSpec(memory_space=pltpu.MemorySpace.VMEM)
    smem = pl.BlockSpec(memory_space=pltpu.MemorySpace.SMEM)
    return pl.pallas_call(
        fused_text_encoder_kernel,
        out_shape=(jax.ShapeDtypeStruct((SEQ, HIDDEN), jnp.float32),
                   jax.ShapeDtypeStruct((1, HIDDEN), jnp.float32)),
        in_specs=[smem, vmem, vmem, vmem],
        out_specs=(vmem, vmem),
    )(ids_plus, cand, mats32, mats64)


# ----------------------------------------------------------------------------------------
# Raw (unfolded) parameters + offline packing into the two slabs
# ----------------------------------------------------------------------------------------
def init_raw_params(key):
    keys = iter(jax.random.split(key, 40))

    def dense(shape, s=0.02):
        return s * jax.random.normal(next(keys), shape, jnp.float32)

    raw = {
        # nn.Parameter from WeightVector.__init__: zeros([mask_k, 1]) with weight[0] = 1.0
        "weight": jnp.zeros((MASK_K, 1), jnp.float32).at[0, 0].set(1.0),
        "token_embedding": dense((VOCAB, HIDDEN)),
        "position_embedding": dense((MAX_POS, HIDDEN)),
    }
    per = {n: [] for n in ["q_w", "q_b", "k_w", "k_b", "v_w", "v_b", "out_w", "out_b",
                           "fc1_w", "fc1_b", "fc2_w", "fc2_b",
                           "ln1_g", "ln1_b", "ln2_g", "ln2_b"]}
    for _ in range(LAYERS):
        per["q_w"].append(dense((HIDDEN, HIDDEN)));  per["q_b"].append(dense((HIDDEN,)))
        per["k_w"].append(dense((HIDDEN, HIDDEN)));  per["k_b"].append(dense((HIDDEN,)))
        per["v_w"].append(dense((HIDDEN, HIDDEN)));  per["v_b"].append(dense((HIDDEN,)))
        per["out_w"].append(dense((HIDDEN, HIDDEN))); per["out_b"].append(dense((HIDDEN,)))
        per["fc1_w"].append(dense((HIDDEN, MLP)));   per["fc1_b"].append(dense((MLP,)))
        per["fc2_w"].append(dense((MLP, HIDDEN)));   per["fc2_b"].append(dense((HIDDEN,)))
        per["ln1_g"].append(1.0 + dense((HIDDEN,))); per["ln1_b"].append(dense((HIDDEN,)))
        per["ln2_g"].append(1.0 + dense((HIDDEN,))); per["ln2_b"].append(dense((HIDDEN,)))
    raw.update({k: jnp.stack(v) for k, v in per.items()})
    raw["final_ln_g"] = 1.0 + dense((HIDDEN,))
    raw["final_ln_b"] = dense((HIDDEN,))
    return raw


def pack_params(raw):
    """Fold LN affines (and q-scale) into projection weights and pack everything into
    two lane-grouped slabs: mats32 (trailing dim 32) and mats64 (trailing dim 64)."""
    scale = HEAD_DIM ** -0.5
    blocks32 = [raw["token_embedding"], raw["position_embedding"][:SEQ]]
    vec_blocks = []
    blocks64 = []
    for l in range(LAYERS):
        g1, b1 = raw["ln1_g"][l], raw["ln1_b"][l]
        qw = (g1[:, None] * raw["q_w"][l]) * scale
        kw = g1[:, None] * raw["k_w"][l]
        vw = g1[:, None] * raw["v_w"][l]
        bq = (b1 @ raw["q_w"][l] + raw["q_b"][l]) * scale
        bk = b1 @ raw["k_w"][l] + raw["k_b"][l]
        bv = b1 @ raw["v_w"][l] + raw["v_b"][l]
        blocks32 += [qw, kw, vw, raw["out_w"][l], raw["fc2_w"][l]]

        vec = jnp.zeros((VEC_ROWS, HIDDEN), jnp.float32)
        vec = vec.at[BQ].set(bq).at[BK].set(bk).at[BV].set(bv)
        vec = vec.at[BO].set(raw["out_b"][l]).at[B2].set(raw["fc2_b"][l])
        vec_blocks.append(vec)

        g2, b2b = raw["ln2_g"][l], raw["ln2_b"][l]
        w1 = g2[:, None] * raw["fc1_w"][l]
        b1m = b2b @ raw["fc1_w"][l] + raw["fc1_b"][l]
        blk = jnp.zeros((M64_LAYER_ROWS, MLP), jnp.float32)
        blk = blk.at[M64_W1:M64_W1 + HIDDEN].set(w1).at[M64_B1].set(b1m)
        blocks64.append(blk)

    blocks32 += vec_blocks
    fin = jnp.zeros((8, HIDDEN), jnp.float32)
    fin = fin.at[FING].set(raw["final_ln_g"]).at[FINB].set(raw["final_ln_b"])
    fin = fin.at[WROW, :MASK_K].set(raw["weight"][:, 0])
    blocks32.append(fin)

    mats32 = jnp.concatenate(blocks32, axis=0)
    mats64 = jnp.concatenate(blocks64, axis=0)
    assert mats32.shape == (TOTAL32, HIDDEN) and mats64.shape == (TOTAL64, MLP)
    return {"mats32": mats32, "mats64": mats64}


# ----------------------------------------------------------------------------------------
# Forward pass mirroring WeightVector.forward (fully jitted, no host sync)
# ----------------------------------------------------------------------------------------
@jax.jit
def weight_vector_forward(packed, input_ids, candidate_embedding_matrix, placeholder_token_id):
    # input_ids: [B=1, S] int32; reference squeezes batch for the placeholder lookup.
    ids_plus = jnp.concatenate(
        [input_ids[0].astype(jnp.int32),
         jnp.reshape(placeholder_token_id, (1,)).astype(jnp.int32)])
    last2d, pooled = fused_text_encoder(
        ids_plus, candidate_embedding_matrix.astype(jnp.float32),
        packed["mats32"], packed["mats64"])
    return last2d[None], pooled            # [1, S, D], [1, D]


# ----------------------------------------------------------------------------------------
# Pure-JAX reference (uses the RAW, unfolded parameters) for numerical validation
# ----------------------------------------------------------------------------------------
def reference_forward(raw, input_ids, cand, placeholder_token_id):
    ids_np = np.asarray(input_ids[0])
    ph = int(np.argwhere(ids_np == placeholder_token_id)[0][0])

    x = raw["token_embedding"][input_ids[0]]
    mixed = (raw["weight"].T @ cand)[0]
    x = x.at[ph].set(mixed)
    x = x + raw["position_embedding"][:SEQ]

    r = np.arange(SEQ)[:, None]
    c = np.arange(SEQ)[None, :]
    causal = jnp.asarray(np.where(c > r, NEG_INF, 0.0), jnp.float32)
    scale = HEAD_DIM ** -0.5

    for l in range(LAYERS):
        h = _layer_norm(x, raw["ln1_g"][l], raw["ln1_b"][l])
        q = (h @ raw["q_w"][l] + raw["q_b"][l]) * scale
        k = h @ raw["k_w"][l] + raw["k_b"][l]
        v = h @ raw["v_w"][l] + raw["v_b"][l]
        heads = []
        for hd in range(HEADS):
            sl = slice(hd * HEAD_DIM, (hd + 1) * HEAD_DIM)
            s = q[:, sl] @ k[:, sl].T + causal
            p = jax.nn.softmax(s, axis=-1)
            heads.append(p @ v[:, sl])
        attn = jnp.concatenate(heads, axis=-1) @ raw["out_w"][l] + raw["out_b"][l]
        x = x + attn
        h2 = _layer_norm(x, raw["ln2_g"][l], raw["ln2_b"][l])
        f = h2 @ raw["fc1_w"][l] + raw["fc1_b"][l]
        f = f * jax.nn.sigmoid(1.702 * f)
        x = x + f @ raw["fc2_w"][l] + raw["fc2_b"][l]

    out = _layer_norm(x, raw["final_ln_g"], raw["final_ln_b"])
    last = out[None]
    pooled = last[jnp.arange(1), jnp.argmax(input_ids, axis=-1)]
    return last, pooled


if __name__ == "__main__":
    key = jax.random.PRNGKey(0)
    raw = init_raw_params(key)
    packed = pack_params(raw)

    placeholder_token_id = jnp.array(49, dtype=jnp.int32)
    input_ids = jnp.array([[5, 12, 49, 7, 3, 60, 2, 9]], dtype=jnp.int32)      # [1, SEQ]
    candidate_embedding_matrix = 0.02 * jax.random.normal(
        jax.random.PRNGKey(1), (MASK_K, HIDDEN), jnp.float32)

    last_hidden_state, pooled_output = weight_vector_forward(
        packed, input_ids, candidate_embedding_matrix, placeholder_token_id)
    jax.block_until_ready((last_hidden_state, pooled_output))

    # numerical check vs. pure-JAX reference (kernel uses folded weights, exact softmax)
    ref_last, ref_pooled = reference_forward(raw, input_ids, candidate_embedding_matrix, 49)
    np.testing.assert_allclose(np.asarray(last_hidden_state), np.asarray(ref_last),
                               rtol=1e-3, atol=1e-4)
    np.testing.assert_allclose(np.asarray(pooled_output), np.asarray(ref_pooled),
                               rtol=1e-3, atol=1e-4)

    assert last_hidden_state.shape == (1, SEQ, HIDDEN)
    assert pooled_output.shape == (1, HIDDEN)
    assert bool(jnp.all(jnp.isfinite(last_hidden_state)))
    print("KERNEL_OK")
</pallas_src>

<mosaic_0001>
module attributes {stable_mosaic.version = 11 : i64} {
  func.func @fused_text_encoder_kernel(%arg0: memref<9xi32, #tpu.memory_space<smem>>, %arg1: memref<4x32xf32, #tpu.memory_space<vmem>>, %arg2: memref<480x32xf32, #tpu.memory_space<vmem>>, %arg3: memref<80x64xf32, #tpu.memory_space<vmem>>, %arg4: memref<8x32xf32, #tpu.memory_space<vmem>>, %arg5: memref<1x32xf32, #tpu.memory_space<vmem>>) attributes {dimension_semantics = [], scalar_prefetch = 0 : i64, scratch_operands = 0 : i64, tpu.core_type = #tpu.core_type<tc>} {
    %c8 = arith.constant 8 : index
    %0 = memref.load %arg0[%c8] : memref<9xi32, #tpu.memory_space<smem>>
    %c0 = arith.constant 0 : index
    %1 = memref.load %arg0[%c0] : memref<9xi32, #tpu.memory_space<smem>>
    %c0_0 = arith.constant 0 : index
    %2 = memref.load %arg0[%c0_0] : memref<9xi32, #tpu.memory_space<smem>>
    %3 = arith.cmpi eq, %2, %0 : i32
    %c-1_i32 = arith.constant -1 : i32
    %c0_i32 = arith.constant 0 : i32
    %4 = arith.cmpi slt, %c-1_i32, %c0_i32 : i32
    %5 = arith.andi %3, %4 : i1
    %c0_i32_1 = arith.constant 0 : i32
    %c-1_i32_2 = arith.constant -1 : i32
    %6 = arith.select %5, %c0_i32_1, %c-1_i32_2 : i32
    %c1 = arith.constant 1 : index
    %7 = memref.load %arg0[%c1] : memref<9xi32, #tpu.memory_space<smem>>
    %8 = arith.cmpi eq, %7, %0 : i32
    %c0_i32_3 = arith.constant 0 : i32
    %9 = arith.cmpi slt, %6, %c0_i32_3 : i32
    %10 = arith.andi %8, %9 : i1
    %c1_i32 = arith.constant 1 : i32
    %11 = arith.select %10, %c1_i32, %6 : i32
    %12 = arith.cmpi sgt, %7, %1 : i32
    %13 = arith.select %12, %7, %1 : i32
    %c1_i32_4 = arith.constant 1 : i32
    %c0_i32_5 = arith.constant 0 : i32
    %14 = arith.select %12, %c1_i32_4, %c0_i32_5 : i32
    %c2 = arith.constant 2 : index
    %15 = memref.load %arg0[%c2] : memref<9xi32, #tpu.memory_space<smem>>
    %16 = arith.cmpi eq, %15, %0 : i32
    %c0_i32_6 = arith.constant 0 : i32
    %17 = arith.cmpi slt, %11, %c0_i32_6 : i32
    %18 = arith.andi %16, %17 : i1
    %c2_i32 = arith.constant 2 : i32
    %19 = arith.select %18, %c2_i32, %11 : i32
    %20 = arith.cmpi sgt, %15, %13 : i32
    %21 = arith.select %20, %15, %13 : i32
    %c2_i32_7 = arith.constant 2 : i32
    %22 = arith.select %20, %c2_i32_7, %14 : i32
    %c3 = arith.constant 3 : index
    %23 = memref.load %arg0[%c3] : memref<9xi32, #tpu.memory_space<smem>>
    %24 = arith.cmpi eq, %23, %0 : i32
    %c0_i32_8 = arith.constant 0 : i32
    %25 = arith.cmpi slt, %19, %c0_i32_8 : i32
    %26 = arith.andi %24, %25 : i1
    %c3_i32 = arith.constant 3 : i32
    %27 = arith.select %26, %c3_i32, %19 : i32
    %28 = arith.cmpi sgt, %23, %21 : i32
    %29 = arith.select %28, %23, %21 : i32
    %c3_i32_9 = arith.constant 3 : i32
    %30 = arith.select %28, %c3_i32_9, %22 : i32
    %c4 = arith.constant 4 : index
    %31 = memref.load %arg0[%c4] : memref<9xi32, #tpu.memory_space<smem>>
    %32 = arith.cmpi eq, %31, %0 : i32
    %c0_i32_10 = arith.constant 0 : i32
    %33 = arith.cmpi slt, %27, %c0_i32_10 : i32
    %34 = arith.andi %32, %33 : i1
    %c4_i32 = arith.constant 4 : i32
    %35 = arith.select %34, %c4_i32, %27 : i32
    %36 = arith.cmpi sgt, %31, %29 : i32
    %37 = arith.select %36, %31, %29 : i32
    %c4_i32_11 = arith.constant 4 : i32
    %38 = arith.select %36, %c4_i32_11, %30 : i32
    %c5 = arith.constant 5 : index
    %39 = memref.load %arg0[%c5] : memref<9xi32, #tpu.memory_space<smem>>
    %40 = arith.cmpi eq, %39, %0 : i32
    %c0_i32_12 = arith.constant 0 : i32
    %41 = arith.cmpi slt, %35, %c0_i32_12 : i32
    %42 = arith.andi %40, %41 : i1
    %c5_i32 = arith.constant 5 : i32
    %43 = arith.select %42, %c5_i32, %35 : i32
    %44 = arith.cmpi sgt, %39, %37 : i32
    %45 = arith.select %44, %39, %37 : i32
    %c5_i32_13 = arith.constant 5 : i32
    %46 = arith.select %44, %c5_i32_13, %38 : i32
    %c6 = arith.constant 6 : index
    %47 = memref.load %arg0[%c6] : memref<9xi32, #tpu.memory_space<smem>>
    %48 = arith.cmpi eq, %47, %0 : i32
    %c0_i32_14 = arith.constant 0 : i32
    %49 = arith.cmpi slt, %43, %c0_i32_14 : i32
    %50 = arith.andi %48, %49 : i1
    %c6_i32 = arith.constant 6 : i32
    %51 = arith.select %50, %c6_i32, %43 : i32
    %52 = arith.cmpi sgt, %47, %45 : i32
    %53 = arith.select %52, %47, %45 : i32
    %c6_i32_15 = arith.constant 6 : i32
    %54 = arith.select %52, %c6_i32_15, %46 : i32
    %c7 = arith.constant 7 : index
    %55 = memref.load %arg0[%c7] : memref<9xi32, #tpu.memory_space<smem>>
    %56 = arith.cmpi eq, %55, %0 : i32
    %c0_i32_16 = arith.constant 0 : i32
    %57 = arith.cmpi slt, %51, %c0_i32_16 : i32
    %58 = arith.andi %56, %57 : i1
    %c7_i32 = arith.constant 7 : i32
    %59 = arith.select %58, %c7_i32, %51 : i32
    %60 = arith.cmpi sgt, %55, %53 : i32
    %c7_i32_17 = arith.constant 7 : i32
    %61 = arith.select %60, %c7_i32_17, %54 : i32
    %62 = tpu.iota {dimensions = array<i32: 0>} : vector<8x1xi32>
    %c0_i32_18 = arith.constant 0 : i32
    %63 = vector.broadcast %c0_i32_18 : i32 to vector<8x1xi32>
    %c0_i32_19 = arith.constant 0 : i32
    %64 = vector.broadcast %c0_i32_19 : i32 to vector<8x1xi32>
    %65 = arith.cmpi eq, %62, %64 : vector<8x1xi32>
    %c0_20 = arith.constant 0 : index
    %66 = memref.load %arg0[%c0_20] : memref<9xi32, #tpu.memory_space<smem>>
    %67 = vector.broadcast %66 : i32 to vector<8x1xi32>
    %68 = arith.select %65, %67, %63 : vector<8x1xi1>, vector<8x1xi32>
    %c1_i32_21 = arith.constant 1 : i32
    %69 = vector.broadcast %c1_i32_21 : i32 to vector<8x1xi32>
    %70 = arith.cmpi eq, %62, %69 : vector<8x1xi32>
    %c1_22 = arith.constant 1 : index
    %71 = memref.load %arg0[%c1_22] : memref<9xi32, #tpu.memory_space<smem>>
    %72 = vector.broadcast %71 : i32 to vector<8x1xi32>
    %73 = arith.select %70, %72, %68 : vector<8x1xi1>, vector<8x1xi32>
    %c2_i32_23 = arith.constant 2 : i32
    %74 = vector.broadcast %c2_i32_23 : i32 to vector<8x1xi32>
    %75 = arith.cmpi eq, %62, %74 : vector<8x1xi32>
    %c2_24 = arith.constant 2 : index
    %76 = memref.load %arg0[%c2_24] : memref<9xi32, #tpu.memory_space<smem>>
    %77 = vector.broadcast %76 : i32 to vector<8x1xi32>
    %78 = arith.select %75, %77, %73 : vector<8x1xi1>, vector<8x1xi32>
    %c3_i32_25 = arith.constant 3 : i32
    %79 = vector.broadcast %c3_i32_25 : i32 to vector<8x1xi32>
    %80 = arith.cmpi eq, %62, %79 : vector<8x1xi32>
    %c3_26 = arith.constant 3 : index
    %81 = memref.load %arg0[%c3_26] : memref<9xi32, #tpu.memory_space<smem>>
    %82 = vector.broadcast %81 : i32 to vector<8x1xi32>
    %83 = arith.select %80, %82, %78 : vector<8x1xi1>, vector<8x1xi32>
    %c4_i32_27 = arith.constant 4 : i32
    %84 = vector.broadcast %c4_i32_27 : i32 to vector<8x1xi32>
    %85 = arith.cmpi eq, %62, %84 : vector<8x1xi32>
    %c4_28 = arith.constant 4 : index
    %86 = memref.load %arg0[%c4_28] : memref<9xi32, #tpu.memory_space<smem>>
    %87 = vector.broadcast %86 : i32 to vector<8x1xi32>
    %88 = arith.select %85, %87, %83 : vector<8x1xi1>, vector<8x1xi32>
    %c5_i32_29 = arith.constant 5 : i32
    %89 = vector.broadcast %c5_i32_29 : i32 to vector<8x1xi32>
    %90 = arith.cmpi eq, %62, %89 : vector<8x1xi32>
    %c5_30 = arith.constant 5 : index
    %91 = memref.load %arg0[%c5_30] : memref<9xi32, #tpu.memory_space<smem>>
    %92 = vector.broadcast %91 : i32 to vector<8x1xi32>
    %93 = arith.select %90, %92, %88 : vector<8x1xi1>, vector<8x1xi32>
    %c6_i32_31 = arith.constant 6 : i32
    %94 = vector.broadcast %c6_i32_31 : i32 to vector<8x1xi32>
    %95 = arith.cmpi eq, %62, %94 : vector<8x1xi32>
    %c6_32 = arith.constant 6 : index
    %96 = memref.load %arg0[%c6_32] : memref<9xi32, #tpu.memory_space<smem>>
    %97 = vector.broadcast %96 : i32 to vector<8x1xi32>
    %98 = arith.select %95, %97, %93 : vector<8x1xi1>, vector<8x1xi32>
    %c7_i32_33 = arith.constant 7 : i32
    %99 = vector.broadcast %c7_i32_33 : i32 to vector<8x1xi32>
    %100 = arith.cmpi eq, %62, %99 : vector<8x1xi32>
    %c7_34 = arith.constant 7 : index
    %101 = memref.load %arg0[%c7_34] : memref<9xi32, #tpu.memory_space<smem>>
    %102 = vector.broadcast %101 : i32 to vector<8x1xi32>
    %103 = arith.select %100, %102, %98 : vector<8x1xi1>, vector<8x1xi32>
    %104 = tpu.iota {dimensions = array<i32: 1>} : vector<8x64xi32>
    %105 = vector.broadcast %103 : vector<8x1xi32> to vector<8x64xi32>
    %106 = arith.cmpi eq, %105, %104 : vector<8x64xi32>
    %107 = arith.extui %106 : vector<8x64xi1> to vector<8x64xi32>
    %108 = arith.sitofp %107 : vector<8x64xi32> to vector<8x64xf32>
    %c0_35 = arith.constant 0 : index
    %c0_36 = arith.constant 0 : index
    %109 = vector.load %arg2[%c0_35, %c0_36] : memref<480x32xf32, #tpu.memory_space<vmem>>, vector<64x32xf32>
    %cst = arith.constant dense<0.000000e+00> : vector<8x32xf32>
    %110 = tpu.matmul %108, %109, %cst {dimension_numbers = #tpu.dot_dimension_numbers<[1], [0], [0], [1], [0, 0, 1, 1], [], []>} : vector<8x64xf32>, vector<64x32xf32>, vector<8x32xf32> -> vector<8x32xf32>
    %c474 = arith.constant 474 : index
    %c0_37 = arith.constant 0 : index
    %111 = vector.load %arg2[%c474, %c0_37] : memref<480x32xf32, #tpu.memory_space<vmem>>, vector<1x4xf32>
    %c0_38 = arith.constant 0 : index
    %c0_39 = arith.constant 0 : index
    %112 = vector.load %arg1[%c0_38, %c0_39] : memref<4x32xf32, #tpu.memory_space<vmem>>, vector<4x32xf32>
    %cst_40 = arith.constant dense<0.000000e+00> : vector<1x32xf32>
    %113 = tpu.matmul %111, %112, %cst_40 {dimension_numbers = #tpu.dot_dimension_numbers<[1], [0], [0], [1], [0, 0, 1, 1], [], []>} : vector<1x4xf32>, vector<4x32xf32>, vector<1x32xf32> -> vector<1x32xf32>
    %114 = tpu.iota {dimensions = array<i32: 0>} : vector<8x32xi32>
    %115 = vector.broadcast %59 : i32 to vector<8x32xi32>
    %116 = arith.cmpi eq, %114, %115 : vector<8x32xi32>
    %117 = vector.shape_cast %113 : vector<1x32xf32> to vector<1x32xf32>
    %118 = vector.broadcast %117 : vector<1x32xf32> to vector<8x32xf32>
    %119 = arith.select %116, %118, %110 : vector<8x32xi1>, vector<8x32xf32>
    %c64 = arith.constant 64 : index
    %c0_41 = arith.constant 0 : index
    %120 = vector.load %arg2[%c64, %c0_41] : memref<480x32xf32, #tpu.memory_space<vmem>>, vector<8x32xf32>
    %121 = arith.addf %119, %120 : vector<8x32xf32>
    %122 = tpu.iota {dimensions = array<i32: 0>} : vector<8x8xi32>
    %123 = tpu.iota {dimensions = array<i32: 1>} : vector<8x8xi32>
    %124 = arith.cmpi sgt, %123, %122 : vector<8x8xi32>
    %cst_42 = arith.constant -3.40282347E+38 : f32
    %cst_43 = arith.constant 0.000000e+00 : f32
    %125 = vector.broadcast %cst_42 : f32 to vector<8x8xf32>
    %126 = vector.broadcast %cst_43 : f32 to vector<8x8xf32>
    %127 = arith.select %124, %125, %126 : vector<8x8xi1>, vector<8x8xf32>
    %cst_44 = arith.constant dense<0.000000e+00> : vector<8xf32>
    %128 = vector.multi_reduction <add>, %121, %cst_44 [1] : vector<8x32xf32> to vector<8xf32>
    %129 = vector.shape_cast %128 : vector<8xf32> to vector<8x1xf32>
    %cst_45 = arith.constant 3.200000e+01 : f32
    %130 = vector.broadcast %cst_45 : f32 to vector<8x1xf32>
    %131 = arith.divf %129, %130 : vector<8x1xf32>
    %132 = vector.broadcast %131 : vector<8x1xf32> to vector<8x32xf32>
    %133 = arith.subf %121, %132 : vector<8x32xf32>
    %134 = arith.mulf %133, %133 : vector<8x32xf32>
    %cst_46 = arith.constant dense<0.000000e+00> : vector<8xf32>
    %135 = vector.multi_reduction <add>, %134, %cst_46 [1] : vector<8x32xf32> to vector<8xf32>
    %136 = vector.shape_cast %135 : vector<8xf32> to vector<8x1xf32>
    %cst_47 = arith.constant 3.200000e+01 : f32
    %137 = vector.broadcast %cst_47 : f32 to vector<8x1xf32>
    %138 = arith.divf %136, %137 : vector<8x1xf32>
    %139 = vector.broadcast %131 : vector<8x1xf32> to vector<8x32xf32>
    %140 = arith.subf %121, %139 : vector<8x32xf32>
    %cst_48 = arith.constant 9.99999974E-6 : f32
    %141 = vector.broadcast %cst_48 : f32 to vector<8x1xf32>
    %142 = arith.addf %138, %141 : vector<8x1xf32>
    %143 = math.rsqrt %142 : vector<8x1xf32>
    %144 = vector.broadcast %143 : vector<8x1xf32> to vector<8x32xf32>
    %145 = arith.mulf %140, %144 : vector<8x32xf32>
    %c72 = arith.constant 72 : index
    %c0_49 = arith.constant 0 : index
    %146 = vector.load %arg2[%c72, %c0_49] : memref<480x32xf32, #tpu.memory_space<vmem>>, vector<32x32xf32>
    %cst_50 = arith.constant dense<0.000000e+00> : vector<8x32xf32>
    %147 = tpu.matmul %145, %146, %cst_50 {dimension_numbers = #tpu.dot_dimension_numbers<[1], [0], [0], [1], [0, 0, 1, 1], [], []>} : vector<8x32xf32>, vector<32x32xf32>, vector<8x32xf32> -> vector<8x32xf32>
    %c456 = arith.constant 456 : index
    %c0_51 = arith.constant 0 : index
    %148 = vector.load %arg2[%c456, %c0_51] : memref<480x32xf32, #tpu.memory_space<vmem>>, vector<1x32xf32>
    %149 = vector.broadcast %148 : vector<1x32xf32> to vector<8x32xf32>
    %150 = arith.addf %147, %149 : vector<8x32xf32>
    %c104 = arith.constant 104 : index
    %c0_52 = arith.constant 0 : index
    %151 = vector.load %arg2[%c104, %c0_52] : memref<480x32xf32, #tpu.memory_space<vmem>>, vector<32x32xf32>
    %cst_53 = arith.constant dense<0.000000e+00> : vector<8x32xf32>
    %152 = tpu.matmul %145, %151, %cst_53 {dimension_numbers = #tpu.dot_dimension_numbers<[1], [0], [0], [1], [0, 0, 1, 1], [], []>} : vector<8x32xf32>, vector<32x32xf32>, vector<8x32xf32> -> vector<8x32xf32>
    %c457 = arith.constant 457 : index
    %c0_54 = arith.constant 0 : index
    %153 = vector.load %arg2[%c457, %c0_54] : memref<480x32xf32, #tpu.memory_space<vmem>>, vector<1x32xf32>
    %154 = vector.broadcast %153 : vector<1x32xf32> to vector<8x32xf32>
    %155 = arith.addf %152, %154 : vector<8x32xf32>
    %c136 = arith.constant 136 : index
    %c0_55 = arith.constant 0 : index
    %156 = vector.load %arg2[%c136, %c0_55] : memref<480x32xf32, #tpu.memory_space<vmem>>, vector<32x32xf32>
    %cst_56 = arith.constant dense<0.000000e+00> : vector<8x32xf32>
    %157 = tpu.matmul %145, %156, %cst_56 {dimension_numbers = #tpu.dot_dimension_numbers<[1], [0], [0], [1], [0, 0, 1, 1], [], []>} : vector<8x32xf32>, vector<32x32xf32>, vector<8x32xf32> -> vector<8x32xf32>
    %c458 = arith.constant 458 : index
    %c0_57 = arith.constant 0 : index
    %158 = vector.load %arg2[%c458, %c0_57] : memref<480x32xf32, #tpu.memory_space<vmem>>, vector<1x32xf32>
    %159 = vector.broadcast %158 : vector<1x32xf32> to vector<8x32xf32>
    %160 = arith.addf %157, %159 : vector<8x32xf32>
    %cst_58 = arith.constant 0.000000e+00 : f32
    %161 = vector.broadcast %cst_58 : f32 to vector<8x32xf32>
    %162 = vector.extract_strided_slice %150 {offsets = [0, 0], sizes = [8, 16], strides = [1, 1]} : vector<8x32xf32> to vector<8x16xf32>
    %163 = vector.extract_strided_slice %155 {offsets = [0, 0], sizes = [8, 16], strides = [1, 1]} : vector<8x32xf32> to vector<8x16xf32>
    %cst_59 = arith.constant dense<0.000000e+00> : vector<8x8xf32>
    %164 = tpu.matmul %162, %163, %cst_59 {dimension_numbers = #tpu.dot_dimension_numbers<[1], [1], [0], [0], [0, 0, 1, 0], [], []>} : vector<8x16xf32>, vector<8x16xf32>, vector<8x8xf32> -> vector<8x8xf32>
    %165 = arith.addf %164, %127 : vector<8x8xf32>
    %cst_60 = arith.constant dense<0xFF800000> : vector<8xf32>
    %166 = vector.multi_reduction <maximumf>, %165, %cst_60 [1] : vector<8x8xf32> to vector<8xf32>
    %167 = vector.shape_cast %166 : vector<8xf32> to vector<8x1xf32>
    %168 = vector.broadcast %167 : vector<8x1xf32> to vector<8x8xf32>
    %169 = arith.subf %165, %168 : vector<8x8xf32>
    %170 = math.exp %169 : vector<8x8xf32>
    %cst_61 = arith.constant dense<0.000000e+00> : vector<8xf32>
    %171 = vector.multi_reduction <add>, %170, %cst_61 [1] : vector<8x8xf32> to vector<8xf32>
    %172 = vector.shape_cast %171 : vector<8xf32> to vector<8x1xf32>
    %173 = vector.broadcast %172 : vector<8x1xf32> to vector<8x8xf32>
    %174 = arith.divf %170, %173 : vector<8x8xf32>
    %175 = vector.extract_strided_slice %160 {offsets = [0, 0], sizes = [8, 16], strides = [1, 1]} : vector<8x32xf32> to vector<8x16xf32>
    %cst_62 = arith.constant dense<0.000000e+00> : vector<8x16xf32>
    %176 = tpu.matmul %174, %175, %cst_62 {dimension_numbers = #tpu.dot_dimension_numbers<[1], [0], [0], [1], [0, 0, 1, 1], [], []>} : vector<8x8xf32>, vector<8x16xf32>, vector<8x16xf32> -> vector<8x16xf32>
    %c168 = arith.constant 168 : index
    %c0_63 = arith.constant 0 : index
    %177 = vector.load %arg2[%c168, %c0_63] : memref<480x32xf32, #tpu.memory_space<vmem>>, vector<16x32xf32>
    %cst_64 = arith.constant dense<0.000000e+00> : vector<8x32xf32>
    %178 = tpu.matmul %176, %177, %cst_64 {dimension_numbers = #tpu.dot_dimension_numbers<[1], [0], [0], [1], [0, 0, 1, 1], [], []>} : vector<8x16xf32>, vector<16x32xf32>, vector<8x32xf32> -> vector<8x32xf32>
    %179 = arith.addf %161, %178 : vector<8x32xf32>
    %180 = vector.extract_strided_slice %150 {offsets = [0, 16], sizes = [8, 16], strides = [1, 1]} : vector<8x32xf32> to vector<8x16xf32>
    %181 = vector.extract_strided_slice %155 {offsets = [0, 16], sizes = [8, 16], strides = [1, 1]} : vector<8x32xf32> to vector<8x16xf32>
    %cst_65 = arith.constant dense<0.000000e+00> : vector<8x8xf32>
    %182 = tpu.matmul %180, %181, %cst_65 {dimension_numbers = #tpu.dot_dimension_numbers<[1], [1], [0], [0], [0, 0, 1, 0], [], []>} : vector<8x16xf32>, vector<8x16xf32>, vector<8x8xf32> -> vector<8x8xf32>
    %183 = arith.addf %182, %127 : vector<8x8xf32>
    %cst_66 = arith.constant dense<0xFF800000> : vector<8xf32>
    %184 = vector.multi_reduction <maximumf>, %183, %cst_66 [1] : vector<8x8xf32> to vector<8xf32>
    %185 = vector.shape_cast %184 : vector<8xf32> to vector<8x1xf32>
    %186 = vector.broadcast %185 : vector<8x1xf32> to vector<8x8xf32>
    %187 = arith.subf %183, %186 : vector<8x8xf32>
    %188 = math.exp %187 : vector<8x8xf32>
    %cst_67 = arith.constant dense<0.000000e+00> : vector<8xf32>
    %189 = vector.multi_reduction <add>, %188, %cst_67 [1] : vector<8x8xf32> to vector<8xf32>
    %190 = vector.shape_cast %189 : vector<8xf32> to vector<8x1xf32>
    %191 = vector.broadcast %190 : vector<8x1xf32> to vector<8x8xf32>
    %192 = arith.divf %188, %191 : vector<8x8xf32>
    %193 = vector.extract_strided_slice %160 {offsets = [0, 16], sizes = [8, 16], strides = [1, 1]} : vector<8x32xf32> to vector<8x16xf32>
    %cst_68 = arith.constant dense<0.000000e+00> : vector<8x16xf32>
    %194 = tpu.matmul %192, %193, %cst_68 {dimension_numbers = #tpu.dot_dimension_numbers<[1], [0], [0], [1], [0, 0, 1, 1], [], []>} : vector<8x8xf32>, vector<8x16xf32>, vector<8x16xf32> -> vector<8x16xf32>
    %c184 = arith.constant 184 : index
    %c0_69 = arith.constant 0 : index
    %195 = vector.load %arg2[%c184, %c0_69] : memref<480x32xf32, #tpu.memory_space<vmem>>, vector<16x32xf32>
    %cst_70 = arith.constant dense<0.000000e+00> : vector<8x32xf32>
    %196 = tpu.matmul %194, %195, %cst_70 {dimension_numbers = #tpu.dot_dimension_numbers<[1], [0], [0], [1], [0, 0, 1, 1], [], []>} : vector<8x16xf32>, vector<16x32xf32>, vector<8x32xf32> -> vector<8x32xf32>
    %197 = arith.addf %179, %196 : vector<8x32xf32>
    %198 = arith.addf %121, %197 : vector<8x32xf32>
    %c459 = arith.constant 459 : index
    %c0_71 = arith.constant 0 : index
    %199 = vector.load %arg2[%c459, %c0_71] : memref<480x32xf32, #tpu.memory_space<vmem>>, vector<1x32xf32>
    %200 = vector.broadcast %199 : vector<1x32xf32> to vector<8x32xf32>
    %201 = arith.addf %198, %200 : vector<8x32xf32>
    %cst_72 = arith.constant dense<0.000000e+00> : vector<8xf32>
    %202 = vector.multi_reduction <add>, %201, %cst_72 [1] : vector<8x32xf32> to vector<8xf32>
    %203 = vector.shape_cast %202 : vector<8xf32> to vector<8x1xf32>
    %cst_73 = arith.constant 3.200000e+01 : f32
    %204 = vector.broadcast %cst_73 : f32 to vector<8x1xf32>
    %205 = arith.divf %203, %204 : vector<8x1xf32>
    %206 = vector.broadcast %205 : vector<8x1xf32> to vector<8x32xf32>
    %207 = arith.subf %201, %206 : vector<8x32xf32>
    %208 = arith.mulf %207, %207 : vector<8x32xf32>
    %cst_74 = arith.constant dense<0.000000e+00> : vector<8xf32>
    %209 = vector.multi_reduction <add>, %208, %cst_74 [1] : vector<8x32xf32> to vector<8xf32>
    %210 = vector.shape_cast %209 : vector<8xf32> to vector<8x1xf32>
    %cst_75 = arith.constant 3.200000e+01 : f32
    %211 = vector.broadcast %cst_75 : f32 to vector<8x1xf32>
    %212 = arith.divf %210, %211 : vector<8x1xf32>
    %213 = vector.broadcast %205 : vector<8x1xf32> to vector<8x32xf32>
    %214 = arith.subf %201, %213 : vector<8x32xf32>
    %cst_76 = arith.constant 9.99999974E-6 : f32
    %215 = vector.broadcast %cst_76 : f32 to vector<8x1xf32>
    %216 = arith.addf %212, %215 : vector<8x1xf32>
    %217 = math.rsqrt %216 : vector<8x1xf32>
    %218 = vector.broadcast %217 : vector<8x1xf32> to vector<8x32xf32>
    %219 = arith.mulf %214, %218 : vector<8x32xf32>
    %c0_77 = arith.constant 0 : index
    %c0_78 = arith.constant 0 : index
    %220 = vector.load %arg3[%c0_77, %c0_78] : memref<80x64xf32, #tpu.memory_space<vmem>>, vector<32x64xf32>
    %cst_79 = arith.constant dense<0.000000e+00> : vector<8x64xf32>
    %221 = tpu.matmul %219, %220, %cst_79 {dimension_numbers = #tpu.dot_dimension_numbers<[1], [0], [0], [1], [0, 0, 1, 1], [], []>} : vector<8x32xf32>, vector<32x64xf32>, vector<8x64xf32> -> vector<8x64xf32>
    %c32 = arith.constant 32 : index
    %c0_80 = arith.constant 0 : index
    %222 = vector.load %arg3[%c32, %c0_80] : memref<80x64xf32, #tpu.memory_space<vmem>>, vector<1x64xf32>
    %223 = vector.broadcast %222 : vector<1x64xf32> to vector<8x64xf32>
    %224 = arith.addf %221, %223 : vector<8x64xf32>
    %cst_81 = arith.constant 1.702000e+00 : f32
    %225 = vector.broadcast %cst_81 : f32 to vector<8x64xf32>
    %226 = arith.mulf %225, %224 : vector<8x64xf32>
    %227 = arith.negf %226 : vector<8x64xf32>
    %228 = math.exp %227 : vector<8x64xf32>
    %cst_82 = arith.constant 1.000000e+00 : f32
    %229 = vector.broadcast %cst_82 : f32 to vector<8x64xf32>
    %230 = arith.addf %229, %228 : vector<8x64xf32>
    %231 = arith.divf %229, %230 : vector<8x64xf32>
    %232 = arith.mulf %224, %231 : vector<8x64xf32>
    %c200 = arith.constant 200 : index
    %c0_83 = arith.constant 0 : index
    %233 = vector.load %arg2[%c200, %c0_83] : memref<480x32xf32, #tpu.memory_space<vmem>>, vector<64x32xf32>
    %cst_84 = arith.constant dense<0.000000e+00> : vector<8x32xf32>
    %234 = tpu.matmul %232, %233, %cst_84 {dimension_numbers = #tpu.dot_dimension_numbers<[1], [0], [0], [1], [0, 0, 1, 1], [], []>} : vector<8x64xf32>, vector<64x32xf32>, vector<8x32xf32> -> vector<8x32xf32>
    %235 = arith.addf %201, %234 : vector<8x32xf32>
    %c460 = arith.constant 460 : index
    %c0_85 = arith.constant 0 : index
    %236 = vector.load %arg2[%c460, %c0_85] : memref<480x32xf32, #tpu.memory_space<vmem>>, vector<1x32xf32>
    %237 = vector.broadcast %236 : vector<1x32xf32> to vector<8x32xf32>
    %238 = arith.addf %235, %237 : vector<8x32xf32>
    %cst_86 = arith.constant dense<0.000000e+00> : vector<8xf32>
    %239 = vector.multi_reduction <add>, %238, %cst_86 [1] : vector<8x32xf32> to vector<8xf32>
    %240 = vector.shape_cast %239 : vector<8xf32> to vector<8x1xf32>
    %cst_87 = arith.constant 3.200000e+01 : f32
    %241 = vector.broadcast %cst_87 : f32 to vector<8x1xf32>
    %242 = arith.divf %240, %241 : vector<8x1xf32>
    %243 = vector.broadcast %242 : vector<8x1xf32> to vector<8x32xf32>
    %244 = arith.subf %238, %243 : vector<8x32xf32>
    %245 = arith.mulf %244, %244 : vector<8x32xf32>
    %cst_88 = arith.constant dense<0.000000e+00> : vector<8xf32>
    %246 = vector.multi_reduction <add>, %245, %cst_88 [1] : vector<8x32xf32> to vector<8xf32>
    %247 = vector.shape_cast %246 : vector<8xf32> to vector<8x1xf32>
    %cst_89 = arith.constant 3.200000e+01 : f32
    %248 = vector.broadcast %cst_89 : f32 to vector<8x1xf32>
    %249 = arith.divf %247, %248 : vector<8x1xf32>
    %250 = vector.broadcast %242 : vector<8x1xf32> to vector<8x32xf32>
    %251 = arith.subf %238, %250 : vector<8x32xf32>
    %cst_90 = arith.constant 9.99999974E-6 : f32
    %252 = vector.broadcast %cst_90 : f32 to vector<8x1xf32>
    %253 = arith.addf %249, %252 : vector<8x1xf32>
    %254 = math.rsqrt %253 : vector<8x1xf32>
    %255 = vector.broadcast %254 : vector<8x1xf32> to vector<8x32xf32>
    %256 = arith.mulf %251, %255 : vector<8x32xf32>
    %c264 = arith.constant 264 : index
    %c0_91 = arith.constant 0 : index
    %257 = vector.load %arg2[%c264, %c0_91] : memref<480x32xf32, #tpu.memory_space<vmem>>, vector<32x32xf32>
    %cst_92 = arith.constant dense<0.000000e+00> : vector<8x32xf32>
    %258 = tpu.matmul %256, %257, %cst_92 {dimension_numbers = #tpu.dot_dimension_numbers<[1], [0], [0], [1], [0, 0, 1, 1], [], []>} : vector<8x32xf32>, vector<32x32xf32>, vector<8x32xf32> -> vector<8x32xf32>
    %c464 = arith.constant 464 : index
    %c0_93 = arith.constant 0 : index
    %259 = vector.load %arg2[%c464, %c0_93] : memref<480x32xf32, #tpu.memory_space<vmem>>, vector<1x32xf32>
    %260 = vector.broadcast %259 : vector<1x32xf32> to vector<8x32xf32>
    %261 = arith.addf %258, %260 : vector<8x32xf32>
    %c296 = arith.constant 296 : index
    %c0_94 = arith.constant 0 : index
    %262 = vector.load %arg2[%c296, %c0_94] : memref<480x32xf32, #tpu.memory_space<vmem>>, vector<32x32xf32>
    %cst_95 = arith.constant dense<0.000000e+00> : vector<8x32xf32>
    %263 = tpu.matmul %256, %262, %cst_95 {dimension_numbers = #tpu.dot_dimension_numbers<[1], [0], [0], [1], [0, 0, 1, 1], [], []>} : vector<8x32xf32>, vector<32x32xf32>, vector<8x32xf32> -> vector<8x32xf32>
    %c465 = arith.constant 465 : index
    %c0_96 = arith.constant 0 : index
    %264 = vector.load %arg2[%c465, %c0_96] : memref<480x32xf32, #tpu.memory_space<vmem>>, vector<1x32xf32>
    %265 = vector.broadcast %264 : vector<1x32xf32> to vector<8x32xf32>
    %266 = arith.addf %263, %265 : vector<8x32xf32>
    %c328 = arith.constant 328 : index
    %c0_97 = arith.constant 0 : index
    %267 = vector.load %arg2[%c328, %c0_97] : memref<480x32xf32, #tpu.memory_space<vmem>>, vector<32x32xf32>
    %cst_98 = arith.constant dense<0.000000e+00> : vector<8x32xf32>
    %268 = tpu.matmul %256, %267, %cst_98 {dimension_numbers = #tpu.dot_dimension_numbers<[1], [0], [0], [1], [0, 0, 1, 1], [], []>} : vector<8x32xf32>, vector<32x32xf32>, vector<8x32xf32> -> vector<8x32xf32>
    %c466 = arith.constant 466 : index
    %c0_99 = arith.constant 0 : index
    %269 = vector.load %arg2[%c466, %c0_99] : memref<480x32xf32, #tpu.memory_space<vmem>>, vector<1x32xf32>
    %270 = vector.broadcast %269 : vector<1x32xf32> to vector<8x32xf32>
    %271 = arith.addf %268, %270 : vector<8x32xf32>
    %cst_100 = arith.constant 0.000000e+00 : f32
    %272 = vector.broadcast %cst_100 : f32 to vector<8x32xf32>
    %273 = vector.extract_strided_slice %261 {offsets = [0, 0], sizes = [8, 16], strides = [1, 1]} : vector<8x32xf32> to vector<8x16xf32>
    %274 = vector.extract_strided_slice %266 {offsets = [0, 0], sizes = [8, 16], strides = [1, 1]} : vector<8x32xf32> to vector<8x16xf32>
    %cst_101 = arith.constant dense<0.000000e+00> : vector<8x8xf32>
    %275 = tpu.matmul %273, %274, %cst_101 {dimension_numbers = #tpu.dot_dimension_numbers<[1], [1], [0], [0], [0, 0, 1, 0], [], []>} : vector<8x16xf32>, vector<8x16xf32>, vector<8x8xf32> -> vector<8x8xf32>
    %276 = arith.addf %275, %127 : vector<8x8xf32>
    %cst_102 = arith.constant dense<0xFF800000> : vector<8xf32>
    %277 = vector.multi_reduction <maximumf>, %276, %cst_102 [1] : vector<8x8xf32> to vector<8xf32>
    %278 = vector.shape_cast %277 : vector<8xf32> to vector<8x1xf32>
    %279 = vector.broadcast %278 : vector<8x1xf32> to vector<8x8xf32>
    %280 = arith.subf %276, %279 : vector<8x8xf32>
    %281 = math.exp %280 : vector<8x8xf32>
    %cst_103 = arith.constant dense<0.000000e+00> : vector<8xf32>
    %282 = vector.multi_reduction <add>, %281, %cst_103 [1] : vector<8x8xf32> to vector<8xf32>
    %283 = vector.shape_cast %282 : vector<8xf32> to vector<8x1xf32>
    %284 = vector.broadcast %283 : vector<8x1xf32> to vector<8x8xf32>
    %285 = arith.divf %281, %284 : vector<8x8xf32>
    %286 = vector.extract_strided_slice %271 {offsets = [0, 0], sizes = [8, 16], strides = [1, 1]} : vector<8x32xf32> to vector<8x16xf32>
    %cst_104 = arith.constant dense<0.000000e+00> : vector<8x16xf32>
    %287 = tpu.matmul %285, %286, %cst_104 {dimension_numbers = #tpu.dot_dimension_numbers<[1], [0], [0], [1], [0, 0, 1, 1], [], []>} : vector<8x8xf32>, vector<8x16xf32>, vector<8x16xf32> -> vector<8x16xf32>
    %c360 = arith.constant 360 : index
    %c0_105 = arith.constant 0 : index
    %288 = vector.load %arg2[%c360, %c0_105] : memref<480x32xf32, #tpu.memory_space<vmem>>, vector<16x32xf32>
    %cst_106 = arith.constant dense<0.000000e+00> : vector<8x32xf32>
    %289 = tpu.matmul %287, %288, %cst_106 {dimension_numbers = #tpu.dot_dimension_numbers<[1], [0], [0], [1], [0, 0, 1, 1], [], []>} : vector<8x16xf32>, vector<16x32xf32>, vector<8x32xf32> -> vector<8x32xf32>
    %290 = arith.addf %272, %289 : vector<8x32xf32>
    %291 = vector.extract_strided_slice %261 {offsets = [0, 16], sizes = [8, 16], strides = [1, 1]} : vector<8x32xf32> to vector<8x16xf32>
    %292 = vector.extract_strided_slice %266 {offsets = [0, 16], sizes = [8, 16], strides = [1, 1]} : vector<8x32xf32> to vector<8x16xf32>
    %cst_107 = arith.constant dense<0.000000e+00> : vector<8x8xf32>
    %293 = tpu.matmul %291, %292, %cst_107 {dimension_numbers = #tpu.dot_dimension_numbers<[1], [1], [0], [0], [0, 0, 1, 0], [], []>} : vector<8x16xf32>, vector<8x16xf32>, vector<8x8xf32> -> vector<8x8xf32>
    %294 = arith.addf %293, %127 : vector<8x8xf32>
    %cst_108 = arith.constant dense<0xFF800000> : vector<8xf32>
    %295 = vector.multi_reduction <maximumf>, %294, %cst_108 [1] : vector<8x8xf32> to vector<8xf32>
    %296 = vector.shape_cast %295 : vector<8xf32> to vector<8x1xf32>
    %297 = vector.broadcast %296 : vector<8x1xf32> to vector<8x8xf32>
    %298 = arith.subf %294, %297 : vector<8x8xf32>
    %299 = math.exp %298 : vector<8x8xf32>
    %cst_109 = arith.constant dense<0.000000e+00> : vector<8xf32>
    %300 = vector.multi_reduction <add>, %299, %cst_109 [1] : vector<8x8xf32> to vector<8xf32>
    %301 = vector.shape_cast %300 : vector<8xf32> to vector<8x1xf32>
    %302 = vector.broadcast %301 : vector<8x1xf32> to vector<8x8xf32>
    %303 = arith.divf %299, %302 : vector<8x8xf32>
    %304 = vector.extract_strided_slice %271 {offsets = [0, 16], sizes = [8, 16], strides = [1, 1]} : vector<8x32xf32> to vector<8x16xf32>
    %cst_110 = arith.constant dense<0.000000e+00> : vector<8x16xf32>
    %305 = tpu.matmul %303, %304, %cst_110 {dimension_numbers = #tpu.dot_dimension_numbers<[1], [0], [0], [1], [0, 0, 1, 1], [], []>} : vector<8x8xf32>, vector<8x16xf32>, vector<8x16xf32> -> vector<8x16xf32>
    %c376 = arith.constant 376 : index
    %c0_111 = arith.constant 0 : index
    %306 = vector.load %arg2[%c376, %c0_111] : memref<480x32xf32, #tpu.memory_space<vmem>>, vector<16x32xf32>
    %cst_112 = arith.constant dense<0.000000e+00> : vector<8x32xf32>
    %307 = tpu.matmul %305, %306, %cst_112 {dimension_numbers = #tpu.dot_dimension_numbers<[1], [0], [0], [1], [0, 0, 1, 1], [], []>} : vector<8x16xf32>, vector<16x32xf32>, vector<8x32xf32> -> vector<8x32xf32>
    %308 = arith.addf %290, %307 : vector<8x32xf32>
    %309 = arith.addf %238, %308 : vector<8x32xf32>
    %c467 = arith.constant 467 : index
    %c0_113 = arith.constant 0 : index
    %310 = vector.load %arg2[%c467, %c0_113] : memref<480x32xf32, #tpu.memory_space<vmem>>, vector<1x32xf32>
    %311 = vector.broadcast %310 : vector<1x32xf32> to vector<8x32xf32>
    %312 = arith.addf %309, %311 : vector<8x32xf32>
    %cst_114 = arith.constant dense<0.000000e+00> : vector<8xf32>
    %313 = vector.multi_reduction <add>, %312, %cst_114 [1] : vector<8x32xf32> to vector<8xf32>
    %314 = vector.shape_cast %313 : vector<8xf32> to vector<8x1xf32>
    %cst_115 = arith.constant 3.200000e+01 : f32
    %315 = vector.broadcast %cst_115 : f32 to vector<8x1xf32>
    %316 = arith.divf %314, %315 : vector<8x1xf32>
    %317 = vector.broadcast %316 : vector<8x1xf32> to vector<8x32xf32>
    %318 = arith.subf %312, %317 : vector<8x32xf32>
    %319 = arith.mulf %318, %318 : vector<8x32xf32>
    %cst_116 = arith.constant dense<0.000000e+00> : vector<8xf32>
    %320 = vector.multi_reduction <add>, %319, %cst_116 [1] : vector<8x32xf32> to vector<8xf32>
    %321 = vector.shape_cast %320 : vector<8xf32> to vector<8x1xf32>
    %cst_117 = arith.constant 3.200000e+01 : f32
    %322 = vector.broadcast %cst_117 : f32 to vector<8x1xf32>
    %323 = arith.divf %321, %322 : vector<8x1xf32>
    %324 = vector.broadcast %316 : vector<8x1xf32> to vector<8x32xf32>
    %325 = arith.subf %312, %324 : vector<8x32xf32>
    %cst_118 = arith.constant 9.99999974E-6 : f32
    %326 = vector.broadcast %cst_118 : f32 to vector<8x1xf32>
    %327 = arith.addf %323, %326 : vector<8x1xf32>
    %328 = math.rsqrt %327 : vector<8x1xf32>
    %329 = vector.broadcast %328 : vector<8x1xf32> to vector<8x32xf32>
    %330 = arith.mulf %325, %329 : vector<8x32xf32>
    %c40 = arith.constant 40 : index
    %c0_119 = arith.constant 0 : index
    %331 = vector.load %arg3[%c40, %c0_119] : memref<80x64xf32, #tpu.memory_space<vmem>>, vector<32x64xf32>
    %cst_120 = arith.constant dense<0.000000e+00> : vector<8x64xf32>
    %332 = tpu.matmul %330, %331, %cst_120 {dimension_numbers = #tpu.dot_dimension_numbers<[1], [0], [0], [1], [0, 0, 1, 1], [], []>} : vector<8x32xf32>, vector<32x64xf32>, vector<8x64xf32> -> vector<8x64xf32>
    %c72_121 = arith.constant 72 : index
    %c0_122 = arith.constant 0 : index
    %333 = vector.load %arg3[%c72_121, %c0_122] : memref<80x64xf32, #tpu.memory_space<vmem>>, vector<1x64xf32>
    %334 = vector.broadcast %333 : vector<1x64xf32> to vector<8x64xf32>
    %335 = arith.addf %332, %334 : vector<8x64xf32>
    %cst_123 = arith.constant 1.702000e+00 : f32
    %336 = vector.broadcast %cst_123 : f32 to vector<8x64xf32>
    %337 = arith.mulf %336, %335 : vector<8x64xf32>
    %338 = arith.negf %337 : vector<8x64xf32>
    %339 = math.exp %338 : vector<8x64xf32>
    %cst_124 = arith.constant 1.000000e+00 : f32
    %340 = vector.broadcast %cst_124 : f32 to vector<8x64xf32>
    %341 = arith.addf %340, %339 : vector<8x64xf32>
    %342 = arith.divf %340, %341 : vector<8x64xf32>
    %343 = arith.mulf %335, %342 : vector<8x64xf32>
    %c392 = arith.constant 392 : index
    %c0_125 = arith.constant 0 : index
    %344 = vector.load %arg2[%c392, %c0_125] : memref<480x32xf32, #tpu.memory_space<vmem>>, vector<64x32xf32>
    %cst_126 = arith.constant dense<0.000000e+00> : vector<8x32xf32>
    %345 = tpu.matmul %343, %344, %cst_126 {dimension_numbers = #tpu.dot_dimension_numbers<[1], [0], [0], [1], [0, 0, 1, 1], [], []>} : vector<8x64xf32>, vector<64x32xf32>, vector<8x32xf32> -> vector<8x32xf32>
    %346 = arith.addf %312, %345 : vector<8x32xf32>
    %c468 = arith.constant 468 : index
    %c0_127 = arith.constant 0 : index
    %347 = vector.load %arg2[%c468, %c0_127] : memref<480x32xf32, #tpu.memory_space<vmem>>, vector<1x32xf32>
    %348 = vector.broadcast %347 : vector<1x32xf32> to vector<8x32xf32>
    %349 = arith.addf %346, %348 : vector<8x32xf32>
    %cst_128 = arith.constant dense<0.000000e+00> : vector<8xf32>
    %350 = vector.multi_reduction <add>, %349, %cst_128 [1] : vector<8x32xf32> to vector<8xf32>
    %351 = vector.shape_cast %350 : vector<8xf32> to vector<8x1xf32>
    %cst_129 = arith.constant 3.200000e+01 : f32
    %352 = vector.broadcast %cst_129 : f32 to vector<8x1xf32>
    %353 = arith.divf %351, %352 : vector<8x1xf32>
    %354 = vector.broadcast %353 : vector<8x1xf32> to vector<8x32xf32>
    %355 = arith.subf %349, %354 : vector<8x32xf32>
    %356 = arith.mulf %355, %355 : vector<8x32xf32>
    %cst_130 = arith.constant dense<0.000000e+00> : vector<8xf32>
    %357 = vector.multi_reduction <add>, %356, %cst_130 [1] : vector<8x32xf32> to vector<8xf32>
    %358 = vector.shape_cast %357 : vector<8xf32> to vector<8x1xf32>
    %cst_131 = arith.constant 3.200000e+01 : f32
    %359 = vector.broadcast %cst_131 : f32 to vector<8x1xf32>
    %360 = arith.divf %358, %359 : vector<8x1xf32>
    %361 = vector.broadcast %353 : vector<8x1xf32> to vector<8x32xf32>
    %362 = arith.subf %349, %361 : vector<8x32xf32>
    %cst_132 = arith.constant 9.99999974E-6 : f32
    %363 = vector.broadcast %cst_132 : f32 to vector<8x1xf32>
    %364 = arith.addf %360, %363 : vector<8x1xf32>
    %365 = math.rsqrt %364 : vector<8x1xf32>
    %366 = vector.broadcast %365 : vector<8x1xf32> to vector<8x32xf32>
    %367 = arith.mulf %362, %366 : vector<8x32xf32>
    %c472 = arith.constant 472 : index
    %c0_133 = arith.constant 0 : index
    %368 = vector.load %arg2[%c472, %c0_133] : memref<480x32xf32, #tpu.memory_space<vmem>>, vector<1x32xf32>
    %369 = vector.broadcast %368 : vector<1x32xf32> to vector<8x32xf32>
    %370 = arith.mulf %367, %369 : vector<8x32xf32>
    %c473 = arith.constant 473 : index
    %c0_134 = arith.constant 0 : index
    %371 = vector.load %arg2[%c473, %c0_134] : memref<480x32xf32, #tpu.memory_space<vmem>>, vector<1x32xf32>
    %372 = vector.broadcast %371 : vector<1x32xf32> to vector<8x32xf32>
    %373 = arith.addf %370, %372 : vector<8x32xf32>
    %c0_135 = arith.constant 0 : index
    %c0_136 = arith.constant 0 : index
    %374 = vector.load %arg4[%c0_135, %c0_136] : memref<8x32xf32, #tpu.memory_space<vmem>>, vector<8x32xf32>
    tpu.vector_store %arg4[%c0_135, %c0_136], %373 {strides = array<i32>} : memref<8x32xf32, #tpu.memory_space<vmem>>, vector<8x32xf32>,
    %375 = vector.broadcast %61 : i32 to vector<8x32xi32>
    %376 = arith.cmpi eq, %114, %375 : vector<8x32xi32>
    %cst_137 = arith.constant 0.000000e+00 : f32
    %377 = vector.broadcast %cst_137 : f32 to vector<8x32xf32>
    %378 = arith.select %376, %373, %377 : vector<8x32xi1>, vector<8x32xf32>
    %cst_138 = arith.constant dense<0.000000e+00> : vector<32xf32>
    %379 = vector.multi_reduction <add>, %378, %cst_138 [0] : vector<8x32xf32> to vector<32xf32>
    %380 = vector.shape_cast %379 : vector<32xf32> to vector<1x32xf32>
    %c0_139 = arith.constant 0 : index
    %c0_140 = arith.constant 0 : index
    %381 = vector.load %arg5[%c0_139, %c0_140] : memref<1x32xf32, #tpu.memory_space<vmem>>, vector<1x32xf32>
    tpu.vector_store %arg5[%c0_139, %c0_140], %380 {strides = array<i32>} : memref<1x32xf32, #tpu.memory_space<vmem>>, vector<1x32xf32>,
    return
  }
}

</mosaic_0001>

<llo_original>
// kernel: weight_vector_forward.1
$region0: #{weight_vector_forward.1}
  #allocation0 [shape = 'u32[]', space=smem, size = 0x4, offset = 0x4, fixed_abs, tag = 'smem constant byte address 0x4 - core index']
  #allocation1 [shape = 'u32[144,128]{1,0:T(1,128)}', space=vmem, size = 0x12000, scoped, tag = 'internal scratch']
  %s0 = inlined_call_operand.vmem [shape: s32[9], index: 0, kind: input, shape index: {}]
  %s1 = inlined_call_operand.vmem [shape: f32[4,32], index: 1, kind: input, shape index: {}]
  %s2 = inlined_call_operand.vmem [shape: f32[480,32], index: 2, kind: input, shape index: {}]
  %s3 = inlined_call_operand.vmem [shape: f32[80,64], index: 3, kind: input, shape index: {}]
  %s4 = inlined_call_operand.hbm [shape: f32[8,32], index: 4, kind: output, shape index: {0}]
  %s5 = inlined_call_operand.hbm [shape: f32[1,32], index: 5, kind: output, shape index: {1}]
  %6 = xla_tuple %s4, %s5
  %s7 = sld [smem:[#allocation0]]
  $region38: #{weight_vector_forward.1} parent=0
    _
  %s9 = ssub.s32 1, %s7
  %s10 = scalar_select 0, %s9, %s7
  $region1: #{weight_vector_forward.1} parent=0
    #allocation2 [shape = 'u8[512]{0}', space=smem, size = 0x200, scoped, tag = 'input window, operand 0, single buffered']
    #allocation3 [shape = 's32[1]{0}', space=sflag, size = 0x4, scoped, tag = 'scoped memory for weight_vector_forward.1']
    #allocation4 [shape = 's32[1]{0}', space=sflag, size = 0x4, scoped, tag = 'scoped memory for weight_vector_forward.1']
    #allocation5 [shape = 'u8[4096]{0}', space=vmem, size = 0x1000, scoped, tag = 'output window, operand 0, single buffered']
    #allocation6 [shape = 'u8[512]{0}', space=vmem, size = 0x400, scoped, tag = 'output window, operand 1, single buffered']
    #allocation7 [shape = 's32[1]{0}', space=sflag, size = 0x4, scoped, tag = 'scoped memory for weight_vector_forward.1']
    %11 = vsyncpa [#allocation4], 0
    %12 = vsyncpa [#allocation3], 0
    %13 = vsyncpa [#allocation7], 0
    // Predicated region
    $region2: #{weight_vector_forward.1} parent=1 // pred_check
      _
    $region3: #{weight_vector_forward.1} parent=1 // pred_check_branch
      %15 = sbr.rel (0) target = $region5
    $region4: #{weight_vector_forward.1} parent=1 // pred_region
      %s17 = ssub.s32 16, 16
      %18 = vsyncadd [#allocation4], %s17
      %s20 = sshll.u32 %s0, 4
      %s21 = int_to_ptr.vmem [resolvable:$true] %s20
      %23 = dma.vmem_to_smem %s21, 16, [#allocation2], [#allocation4]
    $region5: #{weight_vector_forward.1} parent=1 // pred_fallthru
      _
    // Predicated region
    $region6: #{weight_vector_forward.1} parent=1 // pred_check
      _
    $region7: #{weight_vector_forward.1} parent=1 // pred_check_branch
      %25 = sbr.rel (0) target = $region9
    $region8: #{weight_vector_forward.1} parent=1 // pred_region
      _
    $region9: #{weight_vector_forward.1} parent=1 // pred_fallthru
      _
    // Predicated region
    $region10: #{weight_vector_forward.1} parent=1 // pred_check
      _
    $region11: #{weight_vector_forward.1} parent=1 // pred_check_branch
      %27 = sbr.rel (0) target = $region13
    $region12: #{weight_vector_forward.1} parent=1 // pred_region
      _
    $region13: #{weight_vector_forward.1} parent=1 // pred_fallthru
      _
    // Predicated region
    $region14: #{weight_vector_forward.1} parent=1 // pred_check
      _
    $region15: #{weight_vector_forward.1} parent=1 // pred_check_branch
      %29 = sbr.rel (0) target = $region17
    $region16: #{weight_vector_forward.1} parent=1 // pred_region
      _
    $region17: #{weight_vector_forward.1} parent=1 // pred_fallthru
      _
    // Predicated region
    $region18: #{weight_vector_forward.1} parent=1 // pred_check
      _
    $region19: #{weight_vector_forward.1} parent=1 // pred_check_branch
      %31 = sbr.rel (0) target = $region21
    $region20: #{weight_vector_forward.1} parent=1 // pred_region
      %32 = dma.done [#allocation4], 16
    $region21: #{weight_vector_forward.1} parent=1 // pred_fallthru
      _
    %33 = sfence
    %s34 = sld [smem:[#allocation2 + $0x8]]
    %s35 = sld [smem:[#allocation2]]
    %p36 = scmp.eq.s32.totalorder %s35, %s34
    %s37 = scalar_select %p36, 0, 4294967295
    %s38 = sld [smem:[#allocation2 + $0x1]]
    %p39 = scmp.eq.s32.totalorder %s38, %s34
    %p40 = scmp.lt.s32.totalorder %s37, 0
    %p41 = pnand %p39, %p40
    %p42 = pneg %p41
    %s43 = scalar_select %p42, 1, %s37
    %p44 = scmp.gt.s32.totalorder %s38, %s35
    %s45 = scalar_select %p44, %s38, %s35
    %s46 = scalar_select %p44, 1, 0
    %s47 = sld [smem:[#allocation2 + $0x2]]
    %p48 = scmp.eq.s32.totalorder %s47, %s34
    %p49 = scmp.lt.s32.totalorder %s43, 0
    %p50 = pnand %p48, %p49
    %p51 = pneg %p50
    %s52 = scalar_select %p51, 2, %s43
    %p53 = scmp.gt.s32.totalorder %s47, %s45
    %s54 = scalar_select %p53, %s47, %s45
    %s55 = scalar_select %p53, 2, %s46
    %s56 = sld [smem:[#allocation2 + $0x3]]
    %p57 = scmp.eq.s32.totalorder %s56, %s34
    %p58 = scmp.lt.s32.totalorder %s52, 0
    %p59 = pnand %p57, %p58
    %p60 = pneg %p59
    %s61 = scalar_select %p60, 3, %s52
    %p62 = scmp.gt.s32.totalorder %s56, %s54
    %s63 = scalar_select %p62, %s56, %s54
    %s64 = scalar_select %p62, 3, %s55
    %s65 = sld [smem:[#allocation2 + $0x4]]
    %p66 = scmp.eq.s32.totalorder %s65, %s34
    %p67 = scmp.lt.s32.totalorder %s61, 0
    %p68 = pnand %p66, %p67
    %p69 = pneg %p68
    %s70 = scalar_select %p69, 4, %s61
    %p71 = scmp.gt.s32.totalorder %s65, %s63
    %s72 = scalar_select %p71, %s65, %s63
    %s73 = scalar_select %p71, 4, %s64
    %s74 = sld [smem:[#allocation2 + $0x5]]
    %p75 = scmp.eq.s32.totalorder %s74, %s34
    %p76 = scmp.lt.s32.totalorder %s70, 0
    %p77 = pnand %p75, %p76
    %p78 = pneg %p77
    %s79 = scalar_select %p78, 5, %s70
    %p80 = scmp.gt.s32.totalorder %s74, %s72
    %s81 = scalar_select %p80, %s74, %s72
    %s82 = scalar_select %p80, 5, %s73
    %s83 = sld [smem:[#allocation2 + $0x6]]
    %p84 = scmp.eq.s32.totalorder %s83, %s34
    %p85 = scmp.lt.s32.totalorder %s79, 0
    %p86 = pnand %p84, %p85
    %p87 = pneg %p86
    %s88 = scalar_select %p87, 6, %s79
    %p89 = scmp.gt.s32.totalorder %s83, %s81
    %s90 = scalar_select %p89, %s83, %s81
    %s91 = scalar_select %p89, 6, %s82
    %s92 = sld [smem:[#allocation2 + $0x7]]
    %p93 = scmp.eq.s32.totalorder %s92, %s34
    %p94 = scmp.lt.s32.totalorder %s88, 0
    %p95 = pnand %p93, %p94
    %p96 = pneg %p95
    %s97 = scalar_select %p96, 7, %s88
    %p98 = scmp.gt.s32.totalorder %s92, %s90
    %s99 = scalar_select %p98, 7, %s91
    %v100 = vlaneseq
    %v101 = vshrl.u32 %v100, 7
    %vm102 = vcmp.eq.s32.totalorder %v101, 0
    %v103 = vstv %s35
    %v104 = vsel %vm102, %v103, 0
    %vm105 = vcmp.eq.s32.totalorder %v101, 1
    %v106 = vstv %s38
    %v107 = vsel %vm105, %v106, %v104
    %vm108 = vcmp.eq.s32.totalorder %v101, 2
    %v109 = vstv %s47
    %v110 = vsel %vm108, %v109, %v107
    %vm111 = vcmp.eq.s32.totalorder %v101, 3
    %v112 = vstv %s56
    %v113 = vsel %vm111, %v112, %v110
    %vm114 = vcmp.eq.s32.totalorder %v101, 4
    %v115 = vstv %s65
    %v116 = vsel %vm114, %v115, %v113
    %vm117 = vcmp.eq.s32.totalorder %v101, 5
    %v118 = vstv %s74
    %v119 = vsel %vm117, %v118, %v116
    %vm120 = vcmp.eq.s32.totalorder %v101, 6
    %v121 = vstv %s83
    %v122 = vsel %vm120, %v121, %v119
    %vm123 = vcmp.eq.s32.totalorder %v101, 7
    %v124 = vstv %s92
    %v125 = vsel %vm123, %v124, %v122
    %v126 = vlaneseq
    %v127 = vand.u32 %v126, 127
    %vm128 = vcmp.eq.s32.totalorder %v125, %v127
    %v129 = vsel %vm128, 1, 0
    %v130 = vcvt.s32.f32 %v129
    %v131 = vld [vmem:[%s2] sm:$0xff]
    %v132 = vld [vmem:[%s2 + $0x8] sm:$0xff]
    %v133 = vld [vmem:[%s2 + $0x10] sm:$0xff]
    %v134 = vld [vmem:[%s2 + $0x18] sm:$0xff]
    %v135 = vld [vmem:[%s2 + $0x20] sm:$0xff]
    %v136 = vld [vmem:[%s2 + $0x28] sm:$0xff]
    %v137 = vld [vmem:[%s2 + $0x30] sm:$0xff]
    %v138 = vld [vmem:[%s2 + $0x38] sm:$0xff]
    %vm139 = vcmask 523264
    %v141 = vsel %vm139, %v130, 0
    %143 = vmatprep.subr.mxu0 0.0
    %144 = vmatpush1.msra.mxu0 %v131
    %145 = vmatprep.subr.mxu0 0.0
    %146 = vmatpush1.msra.mxu0 %v132
    %147 = vmatprep.subr.mxu0 0.0
    %148 = vmatpush1.msra.mxu0 %v133
    %149 = vmatprep.subr.mxu0 0.0
    %150 = vmatpush1.msra.mxu0 %v134
    %151 = vmatprep.subr.mxu0 0.0
    %152 = vmatpush1.msra.mxu0 %v135
    %153 = vmatprep.subr.mxu0 0.0
    %154 = vmatpush1.msra.mxu0 %v136
    %155 = vmatprep.subr.mxu0 0.0
    %156 = vmatpush1.msra.mxu0 %v137
    %157 = vmatprep.subr.mxu0 0.0
    %158 = vmatpush1.msra.mxu0 %v138
    %159 = vmatprep.subr.mxu0 0.0
    %160 = vmatpush1.msra.mxu0 0.0
    %161 = vmatprep.subr.mxu0 0.0
    %162 = vmatpush1.msra.mxu0 0.0
    %163 = vmatprep.subr.mxu0 0.0
    %164 = vmatpush1.msra.mxu0 0.0
    %165 = vmatprep.subr.mxu0 0.0
    %166 = vmatpush1.msra.mxu0 0.0
    %167 = vmatprep.subr.mxu0 0.0
    %168 = vmatpush1.msra.mxu0 0.0
    %169 = vmatprep.subr.mxu0 0.0
    %170 = vmatpush1.msra.mxu0 0.0
    %171 = vmatprep.subr.mxu0 0.0
    %172 = vmatpush1.msra.mxu0 0.0
    %173 = vmatprep.subr.mxu0 0.0
    %174 = vmatpush1.msra.mxu0 0.0
    %175 = vmatprep.subr.mxu0 0.0
    %176 = vmatpush1.msra.mxu0 0.0
    %177 = vmatprep.subr.mxu0 0.0
    %178 = vmatpush1.msra.mxu0 0.0
    %179 = vmatprep.subr.mxu0 0.0
    %180 = vmatpush1.msra.mxu0 0.0
    %181 = vmatprep.subr.mxu0 0.0
    %182 = vmatpush1.msra.mxu0 0.0
    %183 = vmatprep.subr.mxu0 0.0
    %184 = vmatpush1.msra.mxu0 0.0
    %185 = vmatprep.subr.mxu0 0.0
    %186 = vmatpush1.msra.mxu0 0.0
    %187 = vmatprep.subr.mxu0 0.0
    %188 = vmatpush1.msra.mxu0 0.0
    %189 = vmatprep.subr.mxu0 0.0
    %190 = vmatpush1.msra.mxu0 0.0
    %191 = vmatprep.subr.mxu0 0.0
    %192 = vmatpush1.msra.mxu0 0.0
    %193 = vmatprep.subr.mxu0 0.0
    %194 = vmatpush1.msra.mxu0 0.0
    %195 = vmatprep.subr.mxu0 0.0
    %196 = vmatpush1.msra.mxu0 0.0
    %197 = vmatprep.subr.mxu0 0.0
    %198 = vmatpush1.msra.mxu0 0.0
    %199 = vmatprep.subr.mxu0 0.0
    %200 = vmatpush1.msra.mxu0 0.0
    %201 = vmatprep.subr.mxu0 0.0
    %202 = vmatpush1.msra.mxu0 0.0
    %203 = vmatprep.subr.mxu0 0.0
    %204 = vmatpush1.msra.mxu0 0.0
    %205 = vmatprep.subr.mxu0 0.0
    %206 = vmatpush1.msra.mxu0 0.0
    %207 = vmatprep.mubr.f32.mxu0 0.0
    %208 = vmatmul.mubr.f32.gmra.mrb[0].mxu0 %v141
    %v209 = vpop.f32.mrb[0].mxu0
    %v210 = vadd.f32 0.0, %v209
    %v211 = vpop.f32.mrb[0].mxu0
    %212 = vdwg.mxu0
    %v213 = vld [vmem:[%s2 + $0x1da] sm:$0x1]
    %v214 = vld [vmem:[%s1] sm:$0xf]
    %vm215 = vcmask 31744
    %v217 = vsel %vm215, %v213, 0
    %vm219 = vcmask 1043456
    %v221 = vsel %vm219, %v214, 0
    %223 = vmatprep.subr.mxu0 0.0
    %224 = vmatpush1.msra.mxu0 %v221
    %225 = vmatprep.subr.mxu0 0.0
    %226 = vmatpush1.msra.mxu0 0.0
    %227 = vmatprep.subr.mxu0 0.0
    %228 = vmatpush1.msra.mxu0 0.0
    %229 = vmatprep.subr.mxu0 0.0
    %230 = vmatpush1.msra.mxu0 0.0
    %231 = vmatprep.subr.mxu0 0.0
    %232 = vmatpush1.msra.mxu0 0.0
    %233 = vmatprep.subr.mxu0 0.0
    %234 = vmatpush1.msra.mxu0 0.0
    %235 = vmatprep.subr.mxu0 0.0
    %236 = vmatpush1.msra.mxu0 0.0
    %237 = vmatprep.subr.mxu0 0.0
    %238 = vmatpush1.msra.mxu0 0.0
    %239 = vmatprep.subr.mxu0 0.0
    %240 = vmatpush1.msra.mxu0 0.0
    %241 = vmatprep.subr.mxu0 0.0
    %242 = vmatpush1.msra.mxu0 0.0
    %243 = vmatprep.subr.mxu0 0.0
    %244 = vmatpush1.msra.mxu0 0.0
    %245 = vmatprep.subr.mxu0 0.0
    %246 = vmatpush1.msra.mxu0 0.0
    %247 = vmatprep.subr.mxu0 0.0
    %248 = vmatpush1.msra.mxu0 0.0
    %249 = vmatprep.subr.mxu0 0.0
    %250 = vmatpush1.msra.mxu0 0.0
    %251 = vmatprep.subr.mxu0 0.0
    %252 = vmatpush1.msra.mxu0 0.0
    %253 = vmatprep.subr.mxu0 0.0
    %254 = vmatpush1.msra.mxu0 0.0
    %255 = vmatprep.subr.mxu0 0.0
    %256 = vmatpush1.msra.mxu0 0.0
    %257 = vmatprep.subr.mxu0 0.0
    %258 = vmatpush1.msra.mxu0 0.0
    %259 = vmatprep.subr.mxu0 0.0
    %260 = vmatpush1.msra.mxu0 0.0
    %261 = vmatprep.subr.mxu0 0.0
    %262 = vmatpush1.msra.mxu0 0.0
    %263 = vmatprep.subr.mxu0 0.0
    %264 = vmatpush1.msra.mxu0 0.0
    %265 = vmatprep.subr.mxu0 0.0
    %266 = vmatpush1.msra.mxu0 0.0
    %267 = vmatprep.subr.mxu0 0.0
    %268 = vmatpush1.msra.mxu0 0.0
    %269 = vmatprep.subr.mxu0 0.0
    %270 = vmatpush1.msra.mxu0 0.0
    %271 = vmatprep.subr.mxu0 0.0
    %272 = vmatpush1.msra.mxu0 0.0
    %273 = vmatprep.subr.mxu0 0.0
    %274 = vmatpush1.msra.mxu0 0.0
    %275 = vmatprep.subr.mxu0 0.0
    %276 = vmatpush1.msra.mxu0 0.0
    %277 = vmatprep.subr.mxu0 0.0
    %278 = vmatpush1.msra.mxu0 0.0
    %279 = vmatprep.subr.mxu0 0.0
    %280 = vmatpush1.msra.mxu0 0.0
    %281 = vmatprep.subr.mxu0 0.0
    %282 = vmatpush1.msra.mxu0 0.0
    %283 = vmatprep.subr.mxu0 0.0
    %284 = vmatpush1.msra.mxu0 0.0
    %285 = vmatprep.subr.mxu0 0.0
    %286 = vmatpush1.msra.mxu0 0.0
    %287 = vmatprep.mubr.f32.mxu0 0.0
    %288 = vmatmul.mubr.f32.gmra.mrb[0].mxu0 %v217
    %v289 = vpop.f32.mrb[0].mxu0
    %v290 = vadd.f32 0.0, %v289
    %v291 = vpop.f32.mrb[0].mxu0
    %292 = vdwg.mxu0
    %v293 = vstv %s97
    %vm294 = vcmp.eq.s32.totalorder %v101, %v293
    %v295 = vlaneseq
    %v296 = vshrl.u32 %v295, 7
    %v297 = vsub.s32 0, %v296
    %v298 = vrot.slane %v290, %v297
    %v299 = vsel %vm294, %v298, %v210
    %v300 = vld [vmem:[%s2 + $0x40] sm:$0xff]
    %v301 = vadd.f32 %v299, %v300
    %vm302 = vcmp.gt.s32.totalorder %v127, %v101
    %v303 = vsel %vm302, -3.4028235e+38, 0.0
    %vm304 = vcmask 261120
    %v305 = vsel %vm304, %v301, 0.0
    %306 = vadd.xlane.f32.xlu0 %v305
    %v307 = vpop.xlane.xlu0 %306
    %v308 = vrcp.pop 32.0
    %v309 = vmul.f32 %v307, %v308
    %v310 = vsub.f32 %v301, %v309
    %v311 = vmul.f32 %v310, %v310
    %v312 = vsel %vm304, %v311, 0.0
    %313 = vadd.xlane.f32.xlu0 %v312
    %v314 = vpop.xlane.xlu0 %313
    %v315 = vmul.f32 %v314, %v308
    %v316 = vadd.f32 %v315, 1e-05
    %v317 = vrsqrt.pop %v316
    %v318 = vmul.f32 %v310, %v317
    %v319 = vld [vmem:[%s2 + $0x48] sm:$0xff]
    %v320 = vld [vmem:[%s2 + $0x50] sm:$0xff]
    %v321 = vld [vmem:[%s2 + $0x58] sm:$0xff]
    %v322 = vld [vmem:[%s2 + $0x60] sm:$0xff]
    %v323 = vld [vmem:[%s2 + $0x1c8] sm:$0x1]
    %v324 = vlaneseq
    %v325 = vshrl.u32 %v324, 7
    %v326 = vsub.s32 0, %v325
    %v327 = vrot.slane %v323, %v326
    %v329 = vsel %vm304, %v318, 0
    %331 = vmatprep.subr.mxu0 0.0
    %332 = vmatpush1.msra.mxu0 %v319
    %333 = vmatprep.subr.mxu0 0.0
    %334 = vmatpush1.msra.mxu0 %v320
    %335 = vmatprep.subr.mxu0 0.0
    %336 = vmatpush1.msra.mxu0 %v321
    %337 = vmatprep.subr.mxu0 0.0
    %338 = vmatpush1.msra.mxu0 %v322
    %339 = vmatprep.subr.mxu0 0.0
    %340 = vmatpush1.msra.mxu0 0.0
    %341 = vmatprep.subr.mxu0 0.0
    %342 = vmatpush1.msra.mxu0 0.0
    %343 = vmatprep.subr.mxu0 0.0
    %344 = vmatpush1.msra.mxu0 0.0
    %345 = vmatprep.subr.mxu0 0.0
    %346 = vmatpush1.msra.mxu0 0.0
    %347 = vmatprep.subr.mxu0 0.0
    %348 = vmatpush1.msra.mxu0 0.0
    %349 = vmatprep.subr.mxu0 0.0
    %350 = vmatpush1.msra.mxu0 0.0
    %351 = vmatprep.subr.mxu0 0.0
    %352 = vmatpush1.msra.mxu0 0.0
    %353 = vmatprep.subr.mxu0 0.0
    %354 = vmatpush1.msra.mxu0 0.0
    %355 = vmatprep.subr.mxu0 0.0
    %356 = vmatpush1.msra.mxu0 0.0
    %357 = vmatprep.subr.mxu0 0.0
    %358 = vmatpush1.msra.mxu0 0.0
    %359 = vmatprep.subr.mxu0 0.0
    %360 = vmatpush1.msra.mxu0 0.0
    %361 = vmatprep.subr.mxu0 0.0
    %362 = vmatpush1.msra.mxu0 0.0
    %363 = vmatprep.subr.mxu0 0.0
    %364 = vmatpush1.msra.mxu0 0.0
    %365 = vmatprep.subr.mxu0 0.0
    %366 = vmatpush1.msra.mxu0 0.0
    %367 = vmatprep.subr.mxu0 0.0
    %368 = vmatpush1.msra.mxu0 0.0
    %369 = vmatprep.subr.mxu0 0.0
    %370 = vmatpush1.msra.mxu0 0.0
    %371 = vmatprep.subr.mxu0 0.0
    %372 = vmatpush1.msra.mxu0 0.0
    %373 = vmatprep.subr.mxu0 0.0
    %374 = vmatpush1.msra.mxu0 0.0
    %375 = vmatprep.subr.mxu0 0.0
    %376 = vmatpush1.msra.mxu0 0.0
    %377 = vmatprep.subr.mxu0 0.0
    %378 = vmatpush1.msra.mxu0 0.0
    %379 = vmatprep.subr.mxu0 0.0
    %380 = vmatpush1.msra.mxu0 0.0
    %381 = vmatprep.subr.mxu0 0.0
    %382 = vmatpush1.msra.mxu0 0.0
    %383 = vmatprep.subr.mxu0 0.0
    %384 = vmatpush1.msra.mxu0 0.0
    %385 = vmatprep.subr.mxu0 0.0
    %386 = vmatpush1.msra.mxu0 0.0
    %387 = vmatprep.subr.mxu0 0.0
    %388 = vmatpush1.msra.mxu0 0.0
    %389 = vmatprep.subr.mxu0 0.0
    %390 = vmatpush1.msra.mxu0 0.0
    %391 = vmatprep.subr.mxu0 0.0
    %392 = vmatpush1.msra.mxu0 0.0
    %393 = vmatprep.subr.mxu0 0.0
    %394 = vmatpush1.msra.mxu0 0.0
    %395 = vmatprep.mubr.f32.mxu0 0.0
    %396 = vmatmul.mubr.f32.gmra.mrb[0].mxu0 %v329
    %v397 = vpop.f32.mrb[0].mxu0
    %v398 = vadd.f32 %v327, %v397
    %v399 = vpop.f32.mrb[0].mxu0
    %400 = vdwg.mxu0
    %v401 = vld [vmem:[%s2 + $0x68] sm:$0xff]
    %v402 = vld [vmem:[%s2 + $0x70] sm:$0xff]
    %v403 = vld [vmem:[%s2 + $0x78] sm:$0xff]
    %v404 = vld [vmem:[%s2 + $0x80] sm:$0xff]
    %v405 = vld [vmem:[%s2 + $0x1c9] sm:$0x1]
    %v406 = vlaneseq
    %v407 = vshrl.u32 %v406, 7
    %v408 = vsub.s32 0, %v407
    %v409 = vrot.slane %v405, %v408
    %410 = vmatprep.subr.mxu0 0.0
    %411 = vmatpush1.msra.mxu0 %v401
    %412 = vmatprep.subr.mxu0 0.0
    %413 = vmatpush1.msra.mxu0 %v402
    %414 = vmatprep.subr.mxu0 0.0
    %415 = vmatpush1.msra.mxu0 %v403
    %416 = vmatprep.subr.mxu0 0.0
    %417 = vmatpush1.msra.mxu0 %v404
    %418 = vmatprep.subr.mxu0 0.0
    %419 = vmatpush1.msra.mxu0 0.0
    %420 = vmatprep.subr.mxu0 0.0
    %421 = vmatpush1.msra.mxu0 0.0
    %422 = vmatprep.subr.mxu0 0.0
    %423 = vmatpush1.msra.mxu0 0.0
    %424 = vmatprep.subr.mxu0 0.0
    %425 = vmatpush1.msra.mxu0 0.0
    %426 = vmatprep.subr.mxu0 0.0
    %427 = vmatpush1.msra.mxu0 0.0
    %428 = vmatprep.subr.mxu0 0.0
    %429 = vmatpush1.msra.mxu0 0.0
    %430 = vmatprep.subr.mxu0 0.0
    %431 = vmatpush1.msra.mxu0 0.0
    %432 = vmatprep.subr.mxu0 0.0
    %433 = vmatpush1.msra.mxu0 0.0
    %434 = vmatprep.subr.mxu0 0.0
    %435 = vmatpush1.msra.mxu0 0.0
    %436 = vmatprep.subr.mxu0 0.0
    %437 = vmatpush1.msra.mxu0 0.0
    %438 = vmatprep.subr.mxu0 0.0
    %439 = vmatpush1.msra.mxu0 0.0
    %440 = vmatprep.subr.mxu0 0.0
    %441 = vmatpush1.msra.mxu0 0.0
    %442 = vmatprep.subr.mxu0 0.0
    %443 = vmatpush1.msra.mxu0 0.0
    %444 = vmatprep.subr.mxu0 0.0
    %445 = vmatpush1.msra.mxu0 0.0
    %446 = vmatprep.subr.mxu0 0.0
    %447 = vmatpush1.msra.mxu0 0.0
    %448 = vmatprep.subr.mxu0 0.0
    %449 = vmatpush1.msra.mxu0 0.0
    %450 = vmatprep.subr.mxu0 0.0
    %451 = vmatpush1.msra.mxu0 0.0
    %452 = vmatprep.subr.mxu0 0.0
    %453 = vmatpush1.msra.mxu0 0.0
    %454 = vmatprep.subr.mxu0 0.0
    %455 = vmatpush1.msra.mxu0 0.0
    %456 = vmatprep.subr.mxu0 0.0
    %457 = vmatpush1.msra.mxu0 0.0
    %458 = vmatprep.subr.mxu0 0.0
    %459 = vmatpush1.msra.mxu0 0.0
    %460 = vmatprep.subr.mxu0 0.0
    %461 = vmatpush1.msra.mxu0 0.0
    %462 = vmatprep.subr.mxu0 0.0
    %463 = vmatpush1.msra.mxu0 0.0
    %464 = vmatprep.subr.mxu0 0.0
    %465 = vmatpush1.msra.mxu0 0.0
    %466 = vmatprep.subr.mxu0 0.0
    %467 = vmatpush1.msra.mxu0 0.0
    %468 = vmatprep.subr.mxu0 0.0
    %469 = vmatpush1.msra.mxu0 0.0
    %470 = vmatprep.subr.mxu0 0.0
    %471 = vmatpush1.msra.mxu0 0.0
    %472 = vmatprep.subr.mxu0 0.0
    %473 = vmatpush1.msra.mxu0 0.0
    %474 = vmatprep.mubr.f32.mxu0 0.0
    %475 = vmatmul.mubr.f32.gmra.mrb[0].mxu0 %v329
    %v476 = vpop.f32.mrb[0].mxu0
    %v477 = vadd.f32 %v409, %v476
    %v478 = vpop.f32.mrb[0].mxu0
    %479 = vdwg.mxu0
    %v480 = vld [vmem:[%s2 + $0x88] sm:$0xff]
    %v481 = vld [vmem:[%s2 + $0x90] sm:$0xff]
    %v482 = vld [vmem:[%s2 + $0x98] sm:$0xff]
    %v483 = vld [vmem:[%s2 + $0xa0] sm:$0xff]
    %v484 = vld [vmem:[%s2 + $0x1ca] sm:$0x1]
    %v485 = vlaneseq
    %v486 = vshrl.u32 %v485, 7
    %v487 = vsub.s32 0, %v486
    %v488 = vrot.slane %v484, %v487
    %489 = vmatprep.subr.mxu0 0.0
    %490 = vmatpush1.msra.mxu0 %v480
    %491 = vmatprep.subr.mxu0 0.0
    %492 = vmatpush1.msra.mxu0 %v481
    %493 = vmatprep.subr.mxu0 0.0
    %494 = vmatpush1.msra.mxu0 %v482
    %495 = vmatprep.subr.mxu0 0.0
    %496 = vmatpush1.msra.mxu0 %v483
    %497 = vmatprep.subr.mxu0 0.0
    %498 = vmatpush1.msra.mxu0 0.0
    %499 = vmatprep.subr.mxu0 0.0
    %500 = vmatpush1.msra.mxu0 0.0
    %501 = vmatprep.subr.mxu0 0.0
    %502 = vmatpush1.msra.mxu0 0.0
    %503 = vmatprep.subr.mxu0 0.0
    %504 = vmatpush1.msra.mxu0 0.0
    %505 = vmatprep.subr.mxu0 0.0
    %506 = vmatpush1.msra.mxu0 0.0
    %507 = vmatprep.subr.mxu0 0.0
    %508 = vmatpush1.msra.mxu0 0.0
    %509 = vmatprep.subr.mxu0 0.0
    %510 = vmatpush1.msra.mxu0 0.0
    %511 = vmatprep.subr.mxu0 0.0
    %512 = vmatpush1.msra.mxu0 0.0
    %513 = vmatprep.subr.mxu0 0.0
    %514 = vmatpush1.msra.mxu0 0.0
    %515 = vmatprep.subr.mxu0 0.0
    %516 = vmatpush1.msra.mxu0 0.0
    %517 = vmatprep.subr.mxu0 0.0
    %518 = vmatpush1.msra.mxu0 0.0
    %519 = vmatprep.subr.mxu0 0.0
    %520 = vmatpush1.msra.mxu0 0.0
    %521 = vmatprep.subr.mxu0 0.0
    %522 = vmatpush1.msra.mxu0 0.0
    %523 = vmatprep.subr.mxu0 0.0
    %524 = vmatpush1.msra.mxu0 0.0
    %525 = vmatprep.subr.mxu0 0.0
    %526 = vmatpush1.msra.mxu0 0.0
    %527 = vmatprep.subr.mxu0 0.0
    %528 = vmatpush1.msra.mxu0 0.0
    %529 = vmatprep.subr.mxu0 0.0
    %530 = vmatpush1.msra.mxu0 0.0
    %531 = vmatprep.subr.mxu0 0.0
    %532 = vmatpush1.msra.mxu0 0.0
    %533 = vmatprep.subr.mxu0 0.0
    %534 = vmatpush1.msra.mxu0 0.0
    %535 = vmatprep.subr.mxu0 0.0
    %536 = vmatpush1.msra.mxu0 0.0
    %537 = vmatprep.subr.mxu0 0.0
    %538 = vmatpush1.msra.mxu0 0.0
    %539 = vmatprep.subr.mxu0 0.0
    %540 = vmatpush1.msra.mxu0 0.0
    %541 = vmatprep.subr.mxu0 0.0
    %542 = vmatpush1.msra.mxu0 0.0
    %543 = vmatprep.subr.mxu0 0.0
    %544 = vmatpush1.msra.mxu0 0.0
    %545 = vmatprep.subr.mxu0 0.0
    %546 = vmatpush1.msra.mxu0 0.0
    %547 = vmatprep.subr.mxu0 0.0
    %548 = vmatpush1.msra.mxu0 0.0
    %549 = vmatprep.subr.mxu0 0.0
    %550 = vmatpush1.msra.mxu0 0.0
    %551 = vmatprep.subr.mxu0 0.0
    %552 = vmatpush1.msra.mxu0 0.0
    %553 = vmatprep.mubr.f32.mxu0 0.0
    %554 = vmatmul.mubr.f32.gmra.mrb[0].mxu0 %v329
    %v555 = vpop.f32.mrb[0].mxu0
    %v556 = vadd.f32 %v488, %v555
    %v557 = vpop.f32.mrb[0].mxu0
    %558 = vdwg.mxu0
    %vm559 = vcmask 130048
    %v561 = vsel %vm559, %v398, 0
    %v564 = vsel %vm559, %v477, 0
    %566 = vmatprep.subr.mxu0 0.0
    %567 = vmatpush1.xpose.msra.mxu0 %v564
    %568 = vmatprep.subr.mxu0 0.0
    %569 = vmatpush1.xpose.msra.mxu0 0.0
    %570 = vmatprep.subr.mxu0 0.0
    %571 = vmatpush1.xpose.msra.mxu0 0.0
    %572 = vmatprep.subr.mxu0 0.0
    %573 = vmatpush1.xpose.msra.mxu0 0.0
    %574 = vmatprep.subr.mxu0 0.0
    %575 = vmatpush1.xpose.msra.mxu0 0.0
    %576 = vmatprep.subr.mxu0 0.0
    %577 = vmatpush1.xpose.msra.mxu0 0.0
    %578 = vmatprep.subr.mxu0 0.0
    %579 = vmatpush1.xpose.msra.mxu0 0.0
    %580 = vmatprep.subr.mxu0 0.0
    %581 = vmatpush1.xpose.msra.mxu0 0.0
    %582 = vmatprep.subr.mxu0 0.0
    %583 = vmatpush1.xpose.msra.mxu0 0.0
    %584 = vmatprep.subr.mxu0 0.0
    %585 = vmatpush1.xpose.msra.mxu0 0.0
    %586 = vmatprep.subr.mxu0 0.0
    %587 = vmatpush1.xpose.msra.mxu0 0.0
    %588 = vmatprep.subr.mxu0 0.0
    %589 = vmatpush1.xpose.msra.mxu0 0.0
    %590 = vmatprep.subr.mxu0 0.0
    %591 = vmatpush1.xpose.msra.mxu0 0.0
    %592 = vmatprep.subr.mxu0 0.0
    %593 = vmatpush1.xpose.msra.mxu0 0.0
    %594 = vmatprep.subr.mxu0 0.0
    %595 = vmatpush1.xpose.msra.mxu0 0.0
    %596 = vmatprep.subr.mxu0 0.0
    %597 = vmatpush1.xpose.msra.mxu0 0.0
    %598 = vmatprep.subr.mxu0 0.0
    %599 = vmatpush1.xpose.msra.mxu0 0.0
    %600 = vmatprep.subr.mxu0 0.0
    %601 = vmatpush1.xpose.msra.mxu0 0.0
    %602 = vmatprep.subr.mxu0 0.0
    %603 = vmatpush1.xpose.msra.mxu0 0.0
    %604 = vmatprep.subr.mxu0 0.0
    %605 = vmatpush1.xpose.msra.mxu0 0.0
    %606 = vmatprep.subr.mxu0 0.0
    %607 = vmatpush1.xpose.msra.mxu0 0.0
    %608 = vmatprep.subr.mxu0 0.0
    %609 = vmatpush1.xpose.msra.mxu0 0.0
    %610 = vmatprep.subr.mxu0 0.0
    %611 = vmatpush1.xpose.msra.mxu0 0.0
    %612 = vmatprep.subr.mxu0 0.0
    %613 = vmatpush1.xpose.msra.mxu0 0.0
    %614 = vmatprep.subr.mxu0 0.0
    %615 = vmatpush1.xpose.msra.mxu0 0.0
    %616 = vmatprep.subr.mxu0 0.0
    %617 = vmatpush1.xpose.msra.mxu0 0.0
    %618 = vmatprep.subr.mxu0 0.0
    %619 = vmatpush1.xpose.msra.mxu0 0.0
    %620 = vmatprep.subr.mxu0 0.0
    %621 = vmatpush1.xpose.msra.mxu0 0.0
    %622 = vmatprep.subr.mxu0 0.0
    %623 = vmatpush1.xpose.msra.mxu0 0.0
    %624 = vmatprep.subr.mxu0 0.0
    %625 = vmatpush1.xpose.msra.mxu0 0.0
    %626 = vmatprep.subr.mxu0 0.0
    %627 = vmatpush1.xpose.msra.mxu0 0.0
    %628 = vmatprep.subr.mxu0 0.0
    %629 = vmatpush1.xpose.msra.mxu0 0.0
    %630 = vmatprep.mubr.f32.mxu0 0.0
    %631 = vmatmul.mubr.f32.gmra.mrb[0].mxu0 %v561
    %v632 = vpop.f32.mrb[0].mxu0
    %v633 = vadd.f32 %v303, %v632
    %v634 = vpop.f32.mrb[0].mxu0
    %635 = vdwg.mxu0
    %vm636 = vcmask 64512
    %v637 = vsel %vm636, %v633, -inf
    %638 = vmax.xlane.f32.xlu0 %v637
    %v639 = vpop.xlane.xlu0 %638
    %v640 = vsub.f32 %v633, %v639
    %v641 = vmul.f32 %v640, 1.442695
    %v642 = vpow.pop %v641
    %v643 = vsel %vm636, %v642, 0.0
    %644 = vadd.xlane.f32.xlu0 %v643
    %v645 = vpop.xlane.xlu0 %644
    %v646 = vrcp.pop %v645
    %v647 = vmul.f32 %v642, %v646
    %v649 = vsel %vm636, %v647, 0
    %651 = vmatprep.subr.mxu0 0.0
    %652 = vmatpush1.msra.mxu0 %v556
    %653 = vmatprep.subr.mxu0 0.0
    %654 = vmatpush1.msra.mxu0 0.0
    %655 = vmatprep.subr.mxu0 0.0
    %656 = vmatpush1.msra.mxu0 0.0
    %657 = vmatprep.subr.mxu0 0.0
    %658 = vmatpush1.msra.mxu0 0.0
    %659 = vmatprep.subr.mxu0 0.0
    %660 = vmatpush1.msra.mxu0 0.0
    %661 = vmatprep.subr.mxu0 0.0
    %662 = vmatpush1.msra.mxu0 0.0
    %663 = vmatprep.subr.mxu0 0.0
    %664 = vmatpush1.msra.mxu0 0.0
    %665 = vmatprep.subr.mxu0 0.0
    %666 = vmatpush1.msra.mxu0 0.0
    %667 = vmatprep.subr.mxu0 0.0
    %668 = vmatpush1.msra.mxu0 0.0
    %669 = vmatprep.subr.mxu0 0.0
    %670 = vmatpush1.msra.mxu0 0.0
    %671 = vmatprep.subr.mxu0 0.0
    %672 = vmatpush1.msra.mxu0 0.0
    %673 = vmatprep.subr.mxu0 0.0
    %674 = vmatpush1.msra.mxu0 0.0
    %675 = vmatprep.subr.mxu0 0.0
    %676 = vmatpush1.msra.mxu0 0.0
    %677 = vmatprep.subr.mxu0 0.0
    %678 = vmatpush1.msra.mxu0 0.0
    %679 = vmatprep.subr.mxu0 0.0
    %680 = vmatpush1.msra.mxu0 0.0
    %681 = vmatprep.subr.mxu0 0.0
    %682 = vmatpush1.msra.mxu0 0.0
    %683 = vmatprep.subr.mxu0 0.0
    %684 = vmatpush1.msra.mxu0 0.0
    %685 = vmatprep.subr.mxu0 0.0
    %686 = vmatpush1.msra.mxu0 0.0
    %687 = vmatprep.subr.mxu0 0.0
    %688 = vmatpush1.msra.mxu0 0.0
    %689 = vmatprep.subr.mxu0 0.0
    %690 = vmatpush1.msra.mxu0 0.0
    %691 = vmatprep.subr.mxu0 0.0
    %692 = vmatpush1.msra.mxu0 0.0
    %693 = vmatprep.subr.mxu0 0.0
    %694 = vmatpush1.msra.mxu0 0.0
    %695 = vmatprep.subr.mxu0 0.0
    %696 = vmatpush1.msra.mxu0 0.0
    %697 = vmatprep.subr.mxu0 0.0
    %698 = vmatpush1.msra.mxu0 0.0
    %699 = vmatprep.subr.mxu0 0.0
    %700 = vmatpush1.msra.mxu0 0.0
    %701 = vmatprep.subr.mxu0 0.0
    %702 = vmatpush1.msra.mxu0 0.0
    %703 = vmatprep.subr.mxu0 0.0
    %704 = vmatpush1.msra.mxu0 0.0
    %705 = vmatprep.subr.mxu0 0.0
    %706 = vmatpush1.msra.mxu0 0.0
    %707 = vmatprep.subr.mxu0 0.0
    %708 = vmatpush1.msra.mxu0 0.0
    %709 = vmatprep.subr.mxu0 0.0
    %710 = vmatpush1.msra.mxu0 0.0
    %711 = vmatprep.subr.mxu0 0.0
    %712 = vmatpush1.msra.mxu0 0.0
    %713 = vmatprep.subr.mxu0 0.0
    %714 = vmatpush1.msra.mxu0 0.0
    %715 = vmatprep.mubr.f32.mxu0 0.0
    %716 = vmatmul.mubr.f32.gmra.mrb[0].mxu0 %v649
    %v717 = vpop.f32.mrb[0].mxu0
    %v718 = vadd.f32 0.0, %v717
    %v719 = vpop.f32.mrb[0].mxu0
    %720 = vdwg.mxu0
    %v721 = vld [vmem:[%s2 + $0xa8] sm:$0xff]
    %v722 = vld [vmem:[%s2 + $0xb0] sm:$0xff]
    %723 = vrot.lane.b32.xlu0 %v398, 112
    %v724 = vpop.permute.xlu0 %723
    %725 = vrot.lane.b32.xlu0 %v477, 112
    %v726 = vpop.permute.xlu0 %725
    %v727 = vsel %vm559, %v724, 0
    %v729 = vsel %vm559, %v726, 0
    %731 = vmatprep.subr.mxu0 0.0
    %732 = vmatpush1.xpose.msra.mxu0 %v729
    %733 = vmatprep.subr.mxu0 0.0
    %734 = vmatpush1.xpose.msra.mxu0 0.0
    %735 = vmatprep.subr.mxu0 0.0
    %736 = vmatpush1.xpose.msra.mxu0 0.0
    %737 = vmatprep.subr.mxu0 0.0
    %738 = vmatpush1.xpose.msra.mxu0 0.0
    %739 = vmatprep.subr.mxu0 0.0
    %740 = vmatpush1.xpose.msra.mxu0 0.0
    %741 = vmatprep.subr.mxu0 0.0
    %742 = vmatpush1.xpose.msra.mxu0 0.0
    %743 = vmatprep.subr.mxu0 0.0
    %744 = vmatpush1.xpose.msra.mxu0 0.0
    %745 = vmatprep.subr.mxu0 0.0
    %746 = vmatpush1.xpose.msra.mxu0 0.0
    %747 = vmatprep.subr.mxu0 0.0
    %748 = vmatpush1.xpose.msra.mxu0 0.0
    %749 = vmatprep.subr.mxu0 0.0
    %750 = vmatpush1.xpose.msra.mxu0 0.0
    %751 = vmatprep.subr.mxu0 0.0
    %752 = vmatpush1.xpose.msra.mxu0 0.0
    %753 = vmatprep.subr.mxu0 0.0
    %754 = vmatpush1.xpose.msra.mxu0 0.0
    %755 = vmatprep.subr.mxu0 0.0
    %756 = vmatpush1.xpose.msra.mxu0 0.0
    %757 = vmatprep.subr.mxu0 0.0
    %758 = vmatpush1.xpose.msra.mxu0 0.0
    %759 = vmatprep.subr.mxu0 0.0
    %760 = vmatpush1.xpose.msra.mxu0 0.0
    %761 = vmatprep.subr.mxu0 0.0
    %762 = vmatpush1.xpose.msra.mxu0 0.0
    %763 = vmatprep.subr.mxu0 0.0
    %764 = vmatpush1.xpose.msra.mxu0 0.0
    %765 = vmatprep.subr.mxu0 0.0
    %766 = vmatpush1.xpose.msra.mxu0 0.0
    %767 = vmatprep.subr.mxu0 0.0
    %768 = vmatpush1.xpose.msra.mxu0 0.0
    %769 = vmatprep.subr.mxu0 0.0
    %770 = vmatpush1.xpose.msra.mxu0 0.0
    %771 = vmatprep.subr.mxu0 0.0
    %772 = vmatpush1.xpose.msra.mxu0 0.0
    %773 = vmatprep.subr.mxu0 0.0
    %774 = vmatpush1.xpose.msra.mxu0 0.0
    %775 = vmatprep.subr.mxu0 0.0
    %776 = vmatpush1.xpose.msra.mxu0 0.0
    %777 = vmatprep.subr.mxu0 0.0
    %778 = vmatpush1.xpose.msra.mxu0 0.0
    %779 = vmatprep.subr.mxu0 0.0
    %780 = vmatpush1.xpose.msra.mxu0 0.0
    %781 = vmatprep.subr.mxu0 0.0
    %782 = vmatpush1.xpose.msra.mxu0 0.0
    %783 = vmatprep.subr.mxu0 0.0
    %784 = vmatpush1.xpose.msra.mxu0 0.0
    %785 = vmatprep.subr.mxu0 0.0
    %786 = vmatpush1.xpose.msra.mxu0 0.0
    %787 = vmatprep.subr.mxu0 0.0
    %788 = vmatpush1.xpose.msra.mxu0 0.0
    %789 = vmatprep.subr.mxu0 0.0
    %790 = vmatpush1.xpose.msra.mxu0 0.0
    %791 = vmatprep.subr.mxu0 0.0
    %792 = vmatpush1.xpose.msra.mxu0 0.0
    %793 = vmatprep.subr.mxu0 0.0
    %794 = vmatpush1.xpose.msra.mxu0 0.0
    %795 = vmatprep.mubr.f32.mxu0 0.0
    %796 = vmatmul.mubr.f32.gmra.mrb[0].mxu0 %v727
    %v797 = vpop.f32.mrb[0].mxu0
    %v798 = vadd.f32 %v303, %v797
    %v799 = vpop.f32.mrb[0].mxu0
    %800 = vdwg.mxu0
    %v801 = vsel %vm636, %v798, -inf
    %802 = vmax.xlane.f32.xlu0 %v801
    %v803 = vpop.xlane.xlu0 %802
    %v804 = vsub.f32 %v798, %v803
    %v805 = vmul.f32 %v804, 1.442695
    %v806 = vpow.pop %v805
    %v807 = vsel %vm636, %v806, 0.0
    %808 = vadd.xlane.f32.xlu0 %v807
    %v809 = vpop.xlane.xlu0 %808
    %v810 = vrcp.pop %v809
    %v811 = vmul.f32 %v806, %v810
    %813 = vrot.lane.b32.xlu0 %v556, 112
    %v814 = vpop.permute.xlu0 %813
    %v817 = vsel %vm636, %v811, 0
    %819 = vmatprep.subr.mxu0 0.0
    %820 = vmatpush1.msra.mxu0 %v814
    %821 = vmatprep.subr.mxu0 0.0
    %822 = vmatpush1.msra.mxu0 0.0
    %823 = vmatprep.subr.mxu0 0.0
    %824 = vmatpush1.msra.mxu0 0.0
    %825 = vmatprep.subr.mxu0 0.0
    %826 = vmatpush1.msra.mxu0 0.0
    %827 = vmatprep.subr.mxu0 0.0
    %828 = vmatpush1.msra.mxu0 0.0
    %829 = vmatprep.subr.mxu0 0.0
    %830 = vmatpush1.msra.mxu0 0.0
    %831 = vmatprep.subr.mxu0 0.0
    %832 = vmatpush1.msra.mxu0 0.0
    %833 = vmatprep.subr.mxu0 0.0
    %834 = vmatpush1.msra.mxu0 0.0
    %835 = vmatprep.subr.mxu0 0.0
    %836 = vmatpush1.msra.mxu0 0.0
    %837 = vmatprep.subr.mxu0 0.0
    %838 = vmatpush1.msra.mxu0 0.0
    %839 = vmatprep.subr.mxu0 0.0
    %840 = vmatpush1.msra.mxu0 0.0
    %841 = vmatprep.subr.mxu0 0.0
    %842 = vmatpush1.msra.mxu0 0.0
    %843 = vmatprep.subr.mxu0 0.0
    %844 = vmatpush1.msra.mxu0 0.0
    %845 = vmatprep.subr.mxu0 0.0
    %846 = vmatpush1.msra.mxu0 0.0
    %847 = vmatprep.subr.mxu0 0.0
    %848 = vmatpush1.msra.mxu0 0.0
    %849 = vmatprep.subr.mxu0 0.0
    %850 = vmatpush1.msra.mxu0 0.0
    %851 = vmatprep.subr.mxu0 0.0
    %852 = vmatpush1.msra.mxu0 0.0
    %853 = vmatprep.subr.mxu0 0.0
    %854 = vmatpush1.msra.mxu0 0.0
    %855 = vmatprep.subr.mxu0 0.0
    %856 = vmatpush1.msra.mxu0 0.0
    %857 = vmatprep.subr.mxu0 0.0
    %858 = vmatpush1.msra.mxu0 0.0
    %859 = vmatprep.subr.mxu0 0.0
    %860 = vmatpush1.msra.mxu0 0.0
    %861 = vmatprep.subr.mxu0 0.0
    %862 = vmatpush1.msra.mxu0 0.0
    %863 = vmatprep.subr.mxu0 0.0
    %864 = vmatpush1.msra.mxu0 0.0
    %865 = vmatprep.subr.mxu0 0.0
    %866 = vmatpush1.msra.mxu0 0.0
    %867 = vmatprep.subr.mxu0 0.0
    %868 = vmatpush1.msra.mxu0 0.0
    %869 = vmatprep.subr.mxu0 0.0
    %870 = vmatpush1.msra.mxu0 0.0
    %871 = vmatprep.subr.mxu0 0.0
    %872 = vmatpush1.msra.mxu0 0.0
    %873 = vmatprep.subr.mxu0 0.0
    %874 = vmatpush1.msra.mxu0 0.0
    %875 = vmatprep.subr.mxu0 0.0
    %876 = vmatpush1.msra.mxu0 0.0
    %877 = vmatprep.subr.mxu0 0.0
    %878 = vmatpush1.msra.mxu0 0.0
    %879 = vmatprep.subr.mxu0 0.0
    %880 = vmatpush1.msra.mxu0 0.0
    %881 = vmatprep.subr.mxu0 0.0
    %882 = vmatpush1.msra.mxu0 0.0
    %883 = vmatprep.mubr.f32.mxu0 0.0
    %884 = vmatmul.mubr.f32.gmra.mrb[0].mxu0 %v817
    %v885 = vpop.f32.mrb[0].mxu0
    %v886 = vadd.f32 0.0, %v885
    %v887 = vpop.f32.mrb[0].mxu0
    %888 = vdwg.mxu0
    %v889 = vld [vmem:[%s2 + $0xb8] sm:$0xff]
    %v890 = vld [vmem:[%s2 + $0xc0] sm:$0xff]
    %v892 = vsel %vm559, %v886, 0
    %894 = vmatprep.subr.mxu0 0.0
    %895 = vmatpush1.msra.mxu0 %v889
    %896 = vmatprep.subr.mxu0 0.0
    %897 = vmatpush1.msra.mxu0 %v890
    %898 = vmatprep.subr.mxu0 0.0
    %899 = vmatpush1.msra.mxu0 0.0
    %900 = vmatprep.subr.mxu0 0.0
    %901 = vmatpush1.msra.mxu0 0.0
    %902 = vmatprep.subr.mxu0 0.0
    %903 = vmatpush1.msra.mxu0 0.0
    %904 = vmatprep.subr.mxu0 0.0
    %905 = vmatpush1.msra.mxu0 0.0
    %906 = vmatprep.subr.mxu0 0.0
    %907 = vmatpush1.msra.mxu0 0.0
    %908 = vmatprep.subr.mxu0 0.0
    %909 = vmatpush1.msra.mxu0 0.0
    %910 = vmatprep.subr.mxu0 0.0
    %911 = vmatpush1.msra.mxu0 0.0
    %912 = vmatprep.subr.mxu0 0.0
    %913 = vmatpush1.msra.mxu0 0.0
    %914 = vmatprep.subr.mxu0 0.0
    %915 = vmatpush1.msra.mxu0 0.0
    %916 = vmatprep.subr.mxu0 0.0
    %917 = vmatpush1.msra.mxu0 0.0
    %918 = vmatprep.subr.mxu0 0.0
    %919 = vmatpush1.msra.mxu0 0.0
    %920 = vmatprep.subr.mxu0 0.0
    %921 = vmatpush1.msra.mxu0 0.0
    %922 = vmatprep.subr.mxu0 0.0
    %923 = vmatpush1.msra.mxu0 0.0
    %924 = vmatprep.subr.mxu0 0.0
    %925 = vmatpush1.msra.mxu0 0.0
    %926 = vmatprep.subr.mxu0 0.0
    %927 = vmatpush1.msra.mxu0 0.0
    %928 = vmatprep.subr.mxu0 0.0
    %929 = vmatpush1.msra.mxu0 0.0
    %930 = vmatprep.subr.mxu0 0.0
    %931 = vmatpush1.msra.mxu0 0.0
    %932 = vmatprep.subr.mxu0 0.0
    %933 = vmatpush1.msra.mxu0 0.0
    %934 = vmatprep.subr.mxu0 0.0
    %935 = vmatpush1.msra.mxu0 0.0
    %936 = vmatprep.subr.mxu0 0.0
    %937 = vmatpush1.msra.mxu0 0.0
    %938 = vmatprep.subr.mxu0 0.0
    %939 = vmatpush1.msra.mxu0 0.0
    %940 = vmatprep.subr.mxu0 0.0
    %941 = vmatpush1.msra.mxu0 0.0
    %942 = vmatprep.subr.mxu0 0.0
    %943 = vmatpush1.msra.mxu0 0.0
    %944 = vmatprep.subr.mxu0 0.0
    %945 = vmatpush1.msra.mxu0 0.0
    %946 = vmatprep.subr.mxu0 0.0
    %947 = vmatpush1.msra.mxu0 0.0
    %948 = vmatprep.subr.mxu0 0.0
    %949 = vmatpush1.msra.mxu0 0.0
    %950 = vmatprep.subr.mxu0 0.0
    %951 = vmatpush1.msra.mxu0 0.0
    %952 = vmatprep.subr.mxu0 0.0
    %953 = vmatpush1.msra.mxu0 0.0
    %954 = vmatprep.subr.mxu0 0.0
    %955 = vmatpush1.msra.mxu0 0.0
    %956 = vmatprep.subr.mxu0 0.0
    %957 = vmatpush1.msra.mxu0 0.0
    %958 = vmatprep.mubr.f32.mxu0 0.0
    %959 = vmatmul.mubr.f32.gmra.mrb[0].mxu0 %v892
    %v960 = vpop.f32.mrb[0].mxu0
    %v961 = vadd.f32 0.0, %v960
    %v962 = vpop.f32.mrb[0].mxu0
    %963 = vdwg.mxu0
    %v965 = vsel %vm559, %v718, 0
    %967 = vmatprep.subr.mxu0 0.0
    %968 = vmatpush1.msra.mxu0 %v721
    %969 = vmatprep.subr.mxu0 0.0
    %970 = vmatpush1.msra.mxu0 %v722
    %971 = vmatprep.subr.mxu0 0.0
    %972 = vmatpush1.msra.mxu0 0.0
    %973 = vmatprep.subr.mxu0 0.0
    %974 = vmatpush1.msra.mxu0 0.0
    %975 = vmatprep.subr.mxu0 0.0
    %976 = vmatpush1.msra.mxu0 0.0
    %977 = vmatprep.subr.mxu0 0.0
    %978 = vmatpush1.msra.mxu0 0.0
    %979 = vmatprep.subr.mxu0 0.0
    %980 = vmatpush1.msra.mxu0 0.0
    %981 = vmatprep.subr.mxu0 0.0
    %982 = vmatpush1.msra.mxu0 0.0
    %983 = vmatprep.subr.mxu0 0.0
    %984 = vmatpush1.msra.mxu0 0.0
    %985 = vmatprep.subr.mxu0 0.0
    %986 = vmatpush1.msra.mxu0 0.0
    %987 = vmatprep.subr.mxu0 0.0
    %988 = vmatpush1.msra.mxu0 0.0
    %989 = vmatprep.subr.mxu0 0.0
    %990 = vmatpush1.msra.mxu0 0.0
    %991 = vmatprep.subr.mxu0 0.0
    %992 = vmatpush1.msra.mxu0 0.0
    %993 = vmatprep.subr.mxu0 0.0
    %994 = vmatpush1.msra.mxu0 0.0
    %995 = vmatprep.subr.mxu0 0.0
    %996 = vmatpush1.msra.mxu0 0.0
    %997 = vmatprep.subr.mxu0 0.0
    %998 = vmatpush1.msra.mxu0 0.0
    %999 = vmatprep.subr.mxu0 0.0
    %1000 = vmatpush1.msra.mxu0 0.0
    %1001 = vmatprep.subr.mxu0 0.0
    %1002 = vmatpush1.msra.mxu0 0.0
    %1003 = vmatprep.subr.mxu0 0.0
    %1004 = vmatpush1.msra.mxu0 0.0
    %1005 = vmatprep.subr.mxu0 0.0
    %1006 = vmatpush1.msra.mxu0 0.0
    %1007 = vmatprep.subr.mxu0 0.0
    %1008 = vmatpush1.msra.mxu0 0.0
    %1009 = vmatprep.subr.mxu0 0.0
    %1010 = vmatpush1.msra.mxu0 0.0
    %1011 = vmatprep.subr.mxu0 0.0
    %1012 = vmatpush1.msra.mxu0 0.0
    %1013 = vmatprep.subr.mxu0 0.0
    %1014 = vmatpush1.msra.mxu0 0.0
    %1015 = vmatprep.subr.mxu0 0.0
    %1016 = vmatpush1.msra.mxu0 0.0
    %1017 = vmatprep.subr.mxu0 0.0
    %1018 = vmatpush1.msra.mxu0 0.0
    %1019 = vmatprep.subr.mxu0 0.0
    %1020 = vmatpush1.msra.mxu0 0.0
    %1021 = vmatprep.subr.mxu0 0.0
    %1022 = vmatpush1.msra.mxu0 0.0
    %1023 = vmatprep.subr.mxu0 0.0
    %1024 = vmatpush1.msra.mxu0 0.0
    %1025 = vmatprep.subr.mxu0 0.0
    %1026 = vmatpush1.msra.mxu0 0.0
    %1027 = vmatprep.subr.mxu0 0.0
    %1028 = vmatpush1.msra.mxu0 0.0
    %1029 = vmatprep.subr.mxu0 0.0
    %1030 = vmatpush1.msra.mxu0 0.0
    %1031 = vmatprep.mubr.f32.mxu0 0.0
    %1032 = vmatmul.mubr.f32.gmra.mrb[0].mxu0 %v965
    %v1033 = vpop.f32.mrb[0].mxu0
    %v1034 = vadd.f32 %v961, %v1033
    %v1035 = vpop.f32.mrb[0].mxu0
    %1036 = vdwg.mxu0
    %v1037 = vadd.f32 %v301, %v1034
    %v1038 = vld [vmem:[%s2 + $0x1cb] sm:$0x1]
    %v1039 = vlaneseq
    %v1040 = vshrl.u32 %v1039, 7
    %v1041 = vsub.s32 0, %v1040
    %v1042 = vrot.slane %v1038, %v1041
    %v1043 = vadd.f32 %v1037, %v1042
    %v1044 = vsel %vm304, %v1043, 0.0
    %1045 = vadd.xlane.f32.xlu0 %v1044
    %v1046 = vpop.xlane.xlu0 %1045
    %v1047 = vmul.f32 %v1046, %v308
    %v1048 = vsub.f32 %v1043, %v1047
    %v1049 = vmul.f32 %v1048, %v1048
    %v1050 = vsel %vm304, %v1049, 0.0
    %1051 = vadd.xlane.f32.xlu0 %v1050
    %v1052 = vpop.xlane.xlu0 %1051
    %v1053 = vmul.f32 %v1052, %v308
    %v1054 = vadd.f32 %v1053, 1e-05
    %v1055 = vrsqrt.pop %v1054
    %v1056 = vmul.f32 %v1048, %v1055
    %v1057 = vld [vmem:[%s3] sm:$0xff]
    %v1058 = vld [vmem:[%s3 + $0x8] sm:$0xff]
    %v1059 = vld [vmem:[%s3 + $0x10] sm:$0xff]
    %v1060 = vld [vmem:[%s3 + $0x18] sm:$0xff]
    %v1061 = vld [vmem:[%s3 + $0x20] sm:$0x1]
    %v1062 = vlaneseq
    %v1063 = vshrl.u32 %v1062, 7
    %v1064 = vsub.s32 0, %v1063
    %v1065 = vrot.slane %v1061, %v1064
    %v1067 = vsel %vm304, %v1056, 0
    %1069 = vmatprep.subr.mxu0 0.0
    %1070 = vmatpush1.msra.mxu0 %v1057
    %1071 = vmatprep.subr.mxu0 0.0
    %1072 = vmatpush1.msra.mxu0 %v1058
    %1073 = vmatprep.subr.mxu0 0.0
    %1074 = vmatpush1.msra.mxu0 %v1059
    %1075 = vmatprep.subr.mxu0 0.0
    %1076 = vmatpush1.msra.mxu0 %v1060
    %1077 = vmatprep.subr.mxu0 0.0
    %1078 = vmatpush1.msra.mxu0 0.0
    %1079 = vmatprep.subr.mxu0 0.0
    %1080 = vmatpush1.msra.mxu0 0.0
    %1081 = vmatprep.subr.mxu0 0.0
    %1082 = vmatpush1.msra.mxu0 0.0
    %1083 = vmatprep.subr.mxu0 0.0
    %1084 = vmatpush1.msra.mxu0 0.0
    %1085 = vmatprep.subr.mxu0 0.0
    %1086 = vmatpush1.msra.mxu0 0.0
    %1087 = vmatprep.subr.mxu0 0.0
    %1088 = vmatpush1.msra.mxu0 0.0
    %1089 = vmatprep.subr.mxu0 0.0
    %1090 = vmatpush1.msra.mxu0 0.0
    %1091 = vmatprep.subr.mxu0 0.0
    %1092 = vmatpush1.msra.mxu0 0.0
    %1093 = vmatprep.subr.mxu0 0.0
    %1094 = vmatpush1.msra.mxu0 0.0
    %1095 = vmatprep.subr.mxu0 0.0
    %1096 = vmatpush1.msra.mxu0 0.0
    %1097 = vmatprep.subr.mxu0 0.0
    %1098 = vmatpush1.msra.mxu0 0.0
    %1099 = vmatprep.subr.mxu0 0.0
    %1100 = vmatpush1.msra.mxu0 0.0
    %1101 = vmatprep.subr.mxu0 0.0
    %1102 = vmatpush1.msra.mxu0 0.0
    %1103 = vmatprep.subr.mxu0 0.0
    %1104 = vmatpush1.msra.mxu0 0.0
    %1105 = vmatprep.subr.mxu0 0.0
    %1106 = vmatpush1.msra.mxu0 0.0
    %1107 = vmatprep.subr.mxu0 0.0
    %1108 = vmatpush1.msra.mxu0 0.0
    %1109 = vmatprep.subr.mxu0 0.0
    %1110 = vmatpush1.msra.mxu0 0.0
    %1111 = vmatprep.subr.mxu0 0.0
    %1112 = vmatpush1.msra.mxu0 0.0
    %1113 = vmatprep.subr.mxu0 0.0
    %1114 = vmatpush1.msra.mxu0 0.0
    %1115 = vmatprep.subr.mxu0 0.0
    %1116 = vmatpush1.msra.mxu0 0.0
    %1117 = vmatprep.subr.mxu0 0.0
    %1118 = vmatpush1.msra.mxu0 0.0
    %1119 = vmatprep.subr.mxu0 0.0
    %1120 = vmatpush1.msra.mxu0 0.0
    %1121 = vmatprep.subr.mxu0 0.0
    %1122 = vmatpush1.msra.mxu0 0.0
    %1123 = vmatprep.subr.mxu0 0.0
    %1124 = vmatpush1.msra.mxu0 0.0
    %1125 = vmatprep.subr.mxu0 0.0
    %1126 = vmatpush1.msra.mxu0 0.0
    %1127 = vmatprep.subr.mxu0 0.0
    %1128 = vmatpush1.msra.mxu0 0.0
    %1129 = vmatprep.subr.mxu0 0.0
    %1130 = vmatpush1.msra.mxu0 0.0
    %1131 = vmatprep.subr.mxu0 0.0
    %1132 = vmatpush1.msra.mxu0 0.0
    %1133 = vmatprep.mubr.f32.mxu0 0.0
    %1134 = vmatmul.mubr.f32.gmra.mrb[0].mxu0 %v1067
    %v1135 = vpop.f32.mrb[0].mxu0
    %v1136 = vadd.f32 %v1065, %v1135
    %v1137 = vpop.f32.mrb[0].mxu0
    %1138 = vdwg.mxu0
    %v1139 = vmul.f32 %v1136, 1.702
    %v1140 = vxor.u32 %v1139, 2147483648
    %v1141 = vmul.f32 %v1140, 1.442695
    %v1142 = vpow.pop %v1141
    %v1143 = vadd.f32 %v1142, 1.0
    %v1144 = vrcp.pop %v1143
    %v1145 = vmul.f32 1.0, %v1144
    %v1146 = vmul.f32 %v1136, %v1145
    %v1147 = vld [vmem:[%s2 + $0xc8] sm:$0xff]
    %v1148 = vld [vmem:[%s2 + $0xd0] sm:$0xff]
    %v1149 = vld [vmem:[%s2 + $0xd8] sm:$0xff]
    %v1150 = vld [vmem:[%s2 + $0xe0] sm:$0xff]
    %v1151 = vld [vmem:[%s2 + $0xe8] sm:$0xff]
    %v1152 = vld [vmem:[%s2 + $0xf0] sm:$0xff]
    %v1153 = vld [vmem:[%s2 + $0xf8] sm:$0xff]
    %v1154 = vld [vmem:[%s2 + $0x100] sm:$0xff]
    %v1156 = vsel %vm139, %v1146, 0
    %1158 = vmatprep.subr.mxu0 0.0
    %1159 = vmatpush1.msra.mxu0 %v1147
    %1160 = vmatprep.subr.mxu0 0.0
    %1161 = vmatpush1.msra.mxu0 %v1148
    %1162 = vmatprep.subr.mxu0 0.0
    %1163 = vmatpush1.msra.mxu0 %v1149
    %1164 = vmatprep.subr.mxu0 0.0
    %1165 = vmatpush1.msra.mxu0 %v1150
    %1166 = vmatprep.subr.mxu0 0.0
    %1167 = vmatpush1.msra.mxu0 %v1151
    %1168 = vmatprep.subr.mxu0 0.0
    %1169 = vmatpush1.msra.mxu0 %v1152
    %1170 = vmatprep.subr.mxu0 0.0
    %1171 = vmatpush1.msra.mxu0 %v1153
    %1172 = vmatprep.subr.mxu0 0.0
    %1173 = vmatpush1.msra.mxu0 %v1154
    %1174 = vmatprep.subr.mxu0 0.0
    %1175 = vmatpush1.msra.mxu0 0.0
    %1176 = vmatprep.subr.mxu0 0.0
    %1177 = vmatpush1.msra.mxu0 0.0
    %1178 = vmatprep.subr.mxu0 0.0
    %1179 = vmatpush1.msra.mxu0 0.0
    %1180 = vmatprep.subr.mxu0 0.0
    %1181 = vmatpush1.msra.mxu0 0.0
    %1182 = vmatprep.subr.mxu0 0.0
    %1183 = vmatpush1.msra.mxu0 0.0
    %1184 = vmatprep.subr.mxu0 0.0
    %1185 = vmatpush1.msra.mxu0 0.0
    %1186 = vmatprep.subr.mxu0 0.0
    %1187 = vmatpush1.msra.mxu0 0.0
    %1188 = vmatprep.subr.mxu0 0.0
    %1189 = vmatpush1.msra.mxu0 0.0
    %1190 = vmatprep.subr.mxu0 0.0
    %1191 = vmatpush1.msra.mxu0 0.0
    %1192 = vmatprep.subr.mxu0 0.0
    %1193 = vmatpush1.msra.mxu0 0.0
    %1194 = vmatprep.subr.mxu0 0.0
    %1195 = vmatpush1.msra.mxu0 0.0
    %1196 = vmatprep.subr.mxu0 0.0
    %1197 = vmatpush1.msra.mxu0 0.0
    %1198 = vmatprep.subr.mxu0 0.0
    %1199 = vmatpush1.msra.mxu0 0.0
    %1200 = vmatprep.subr.mxu0 0.0
    %1201 = vmatpush1.msra.mxu0 0.0
    %1202 = vmatprep.subr.mxu0 0.0
    %1203 = vmatpush1.msra.mxu0 0.0
    %1204 = vmatprep.subr.mxu0 0.0
    %1205 = vmatpush1.msra.mxu0 0.0
    %1206 = vmatprep.subr.mxu0 0.0
    %1207 = vmatpush1.msra.mxu0 0.0
    %1208 = vmatprep.subr.mxu0 0.0
    %1209 = vmatpush1.msra.mxu0 0.0
    %1210 = vmatprep.subr.mxu0 0.0
    %1211 = vmatpush1.msra.mxu0 0.0
    %1212 = vmatprep.subr.mxu0 0.0
    %1213 = vmatpush1.msra.mxu0 0.0
    %1214 = vmatprep.subr.mxu0 0.0
    %1215 = vmatpush1.msra.mxu0 0.0
    %1216 = vmatprep.subr.mxu0 0.0
    %1217 = vmatpush1.msra.mxu0 0.0
    %1218 = vmatprep.subr.mxu0 0.0
    %1219 = vmatpush1.msra.mxu0 0.0
    %1220 = vmatprep.subr.mxu0 0.0
    %1221 = vmatpush1.msra.mxu0 0.0
    %1222 = vmatprep.mubr.f32.mxu0 0.0
    %1223 = vmatmul.mubr.f32.gmra.mrb[0].mxu0 %v1156
    %v1224 = vpop.f32.mrb[0].mxu0
    %v1225 = vadd.f32 0.0, %v1224
    %v1226 = vpop.f32.mrb[0].mxu0
    %1227 = vdwg.mxu0
    %v1228 = vadd.f32 %v1043, %v1225
    %v1229 = vld [vmem:[%s2 + $0x1cc] sm:$0x1]
    %v1230 = vlaneseq
    %v1231 = vshrl.u32 %v1230, 7
    %v1232 = vsub.s32 0, %v1231
    %v1233 = vrot.slane %v1229, %v1232
    %v1234 = vadd.f32 %v1228, %v1233
    %v1235 = vsel %vm304, %v1234, 0.0
    %1236 = vadd.xlane.f32.xlu0 %v1235
    %v1237 = vpop.xlane.xlu0 %1236
    %v1238 = vmul.f32 %v1237, %v308
    %v1239 = vsub.f32 %v1234, %v1238
    %v1240 = vmul.f32 %v1239, %v1239
    %v1241 = vsel %vm304, %v1240, 0.0
    %1242 = vadd.xlane.f32.xlu0 %v1241
    %v1243 = vpop.xlane.xlu0 %1242
    %v1244 = vmul.f32 %v1243, %v308
    %v1245 = vadd.f32 %v1244, 1e-05
    %v1246 = vrsqrt.pop %v1245
    %v1247 = vmul.f32 %v1239, %v1246
    %v1248 = vld [vmem:[%s2 + $0x108] sm:$0xff]
    %v1249 = vld [vmem:[%s2 + $0x110] sm:$0xff]
    %v1250 = vld [vmem:[%s2 + $0x118] sm:$0xff]
    %v1251 = vld [vmem:[%s2 + $0x120] sm:$0xff]
    %v1252 = vld [vmem:[%s2 + $0x1d0] sm:$0x1]
    %v1253 = vlaneseq
    %v1254 = vshrl.u32 %v1253, 7
    %v1255 = vsub.s32 0, %v1254
    %v1256 = vrot.slane %v1252, %v1255
    %v1258 = vsel %vm304, %v1247, 0
    %1260 = vmatprep.subr.mxu0 0.0
    %1261 = vmatpush1.msra.mxu0 %v1248
    %1262 = vmatprep.subr.mxu0 0.0
    %1263 = vmatpush1.msra.mxu0 %v1249
    %1264 = vmatprep.subr.mxu0 0.0
    %1265 = vmatpush1.msra.mxu0 %v1250
    %1266 = vmatprep.subr.mxu0 0.0
    %1267 = vmatpush1.msra.mxu0 %v1251
    %1268 = vmatprep.subr.mxu0 0.0
    %1269 = vmatpush1.msra.mxu0 0.0
    %1270 = vmatprep.subr.mxu0 0.0
    %1271 = vmatpush1.msra.mxu0 0.0
    %1272 = vmatprep.subr.mxu0 0.0
    %1273 = vmatpush1.msra.mxu0 0.0
    %1274 = vmatprep.subr.mxu0 0.0
    %1275 = vmatpush1.msra.mxu0 0.0
    %1276 = vmatprep.subr.mxu0 0.0
    %1277 = vmatpush1.msra.mxu0 0.0
    %1278 = vmatprep.subr.mxu0 0.0
    %1279 = vmatpush1.msra.mxu0 0.0
    %1280 = vmatprep.subr.mxu0 0.0
    %1281 = vmatpush1.msra.mxu0 0.0
    %1282 = vmatprep.subr.mxu0 0.0
    %1283 = vmatpush1.msra.mxu0 0.0
    %1284 = vmatprep.subr.mxu0 0.0
    %1285 = vmatpush1.msra.mxu0 0.0
    %1286 = vmatprep.subr.mxu0 0.0
    %1287 = vmatpush1.msra.mxu0 0.0
    %1288 = vmatprep.subr.mxu0 0.0
    %1289 = vmatpush1.msra.mxu0 0.0
    %1290 = vmatprep.subr.mxu0 0.0
    %1291 = vmatpush1.msra.mxu0 0.0
    %1292 = vmatprep.subr.mxu0 0.0
    %1293 = vmatpush1.msra.mxu0 0.0
    %1294 = vmatprep.subr.mxu0 0.0
    %1295 = vmatpush1.msra.mxu0 0.0
    %1296 = vmatprep.subr.mxu0 0.0
    %1297 = vmatpush1.msra.mxu0 0.0
    %1298 = vmatprep.subr.mxu0 0.0
    %1299 = vmatpush1.msra.mxu0 0.0
    %1300 = vmatprep.subr.mxu0 0.0
    %1301 = vmatpush1.msra.mxu0 0.0
    %1302 = vmatprep.subr.mxu0 0.0
    %1303 = vmatpush1.msra.mxu0 0.0
    %1304 = vmatprep.subr.mxu0 0.0
    %1305 = vmatpush1.msra.mxu0 0.0
    %1306 = vmatprep.subr.mxu0 0.0
    %1307 = vmatpush1.msra.mxu0 0.0
    %1308 = vmatprep.subr.mxu0 0.0
    %1309 = vmatpush1.msra.mxu0 0.0
    %1310 = vmatprep.subr.mxu0 0.0
    %1311 = vmatpush1.msra.mxu0 0.0
    %1312 = vmatprep.subr.mxu0 0.0
    %1313 = vmatpush1.msra.mxu0 0.0
    %1314 = vmatprep.subr.mxu0 0.0
    %1315 = vmatpush1.msra.mxu0 0.0
    %1316 = vmatprep.subr.mxu0 0.0
    %1317 = vmatpush1.msra.mxu0 0.0
    %1318 = vmatprep.subr.mxu0 0.0
    %1319 = vmatpush1.msra.mxu0 0.0
    %1320 = vmatprep.subr.mxu0 0.0
    %1321 = vmatpush1.msra.mxu0 0.0
    %1322 = vmatprep.subr.mxu0 0.0
    %1323 = vmatpush1.msra.mxu0 0.0
    %1324 = vmatprep.mubr.f32.mxu0 0.0
    %1325 = vmatmul.mubr.f32.gmra.mrb[0].mxu0 %v1258
    %v1326 = vpop.f32.mrb[0].mxu0
    %v1327 = vadd.f32 %v1256, %v1326
    %v1328 = vpop.f32.mrb[0].mxu0
    %1329 = vdwg.mxu0
    %v1330 = vld [vmem:[%s2 + $0x128] sm:$0xff]
    %v1331 = vld [vmem:[%s2 + $0x130] sm:$0xff]
    %v1332 = vld [vmem:[%s2 + $0x138] sm:$0xff]
    %v1333 = vld [vmem:[%s2 + $0x140] sm:$0xff]
    %v1334 = vld [vmem:[%s2 + $0x1d1] sm:$0x1]
    %v1335 = vlaneseq
    %v1336 = vshrl.u32 %v1335, 7
    %v1337 = vsub.s32 0, %v1336
    %v1338 = vrot.slane %v1334, %v1337
    %1339 = vmatprep.subr.mxu0 0.0
    %1340 = vmatpush1.msra.mxu0 %v1330
    %1341 = vmatprep.subr.mxu0 0.0
    %1342 = vmatpush1.msra.mxu0 %v1331
    %1343 = vmatprep.subr.mxu0 0.0
    %1344 = vmatpush1.msra.mxu0 %v1332
    %1345 = vmatprep.subr.mxu0 0.0
    %1346 = vmatpush1.msra.mxu0 %v1333
    %1347 = vmatprep.subr.mxu0 0.0
    %1348 = vmatpush1.msra.mxu0 0.0
    %1349 = vmatprep.subr.mxu0 0.0
    %1350 = vmatpush1.msra.mxu0 0.0
    %1351 = vmatprep.subr.mxu0 0.0
    %1352 = vmatpush1.msra.mxu0 0.0
    %1353 = vmatprep.subr.mxu0 0.0
    %1354 = vmatpush1.msra.mxu0 0.0
    %1355 = vmatprep.subr.mxu0 0.0
    %1356 = vmatpush1.msra.mxu0 0.0
    %1357 = vmatprep.subr.mxu0 0.0
    %1358 = vmatpush1.msra.mxu0 0.0
    %1359 = vmatprep.subr.mxu0 0.0
    %1360 = vmatpush1.msra.mxu0 0.0
    %1361 = vmatprep.subr.mxu0 0.0
    %1362 = vmatpush1.msra.mxu0 0.0
    %1363 = vmatprep.subr.mxu0 0.0
    %1364 = vmatpush1.msra.mxu0 0.0
    %1365 = vmatprep.subr.mxu0 0.0
    %1366 = vmatpush1.msra.mxu0 0.0
    %1367 = vmatprep.subr.mxu0 0.0
    %1368 = vmatpush1.msra.mxu0 0.0
    %1369 = vmatprep.subr.mxu0 0.0
    %1370 = vmatpush1.msra.mxu0 0.0
    %1371 = vmatprep.subr.mxu0 0.0
    %1372 = vmatpush1.msra.mxu0 0.0
    %1373 = vmatprep.subr.mxu0 0.0
    %1374 = vmatpush1.msra.mxu0 0.0
    %1375 = vmatprep.subr.mxu0 0.0
    %1376 = vmatpush1.msra.mxu0 0.0
    %1377 = vmatprep.subr.mxu0 0.0
    %1378 = vmatpush1.msra.mxu0 0.0
    %1379 = vmatprep.subr.mxu0 0.0
    %1380 = vmatpush1.msra.mxu0 0.0
    %1381 = vmatprep.subr.mxu0 0.0
    %1382 = vmatpush1.msra.mxu0 0.0
    %1383 = vmatprep.subr.mxu0 0.0
    %1384 = vmatpush1.msra.mxu0 0.0
    %1385 = vmatprep.subr.mxu0 0.0
    %1386 = vmatpush1.msra.mxu0 0.0
    %1387 = vmatprep.subr.mxu0 0.0
    %1388 = vmatpush1.msra.mxu0 0.0
    %1389 = vmatprep.subr.mxu0 0.0
    %1390 = vmatpush1.msra.mxu0 0.0
    %1391 = vmatprep.subr.mxu0 0.0
    %1392 = vmatpush1.msra.mxu0 0.0
    %1393 = vmatprep.subr.mxu0 0.0
    %1394 = vmatpush1.msra.mxu0 0.0
    %1395 = vmatprep.subr.mxu0 0.0
    %1396 = vmatpush1.msra.mxu0 0.0
    %1397 = vmatprep.subr.mxu0 0.0
    %1398 = vmatpush1.msra.mxu0 0.0
    %1399 = vmatprep.subr.mxu0 0.0
    %1400 = vmatpush1.msra.mxu0 0.0
    %1401 = vmatprep.subr.mxu0 0.0
    %1402 = vmatpush1.msra.mxu0 0.0
    %1403 = vmatprep.mubr.f32.mxu0 0.0
    %1404 = vmatmul.mubr.f32.gmra.mrb[0].mxu0 %v1258
    %v1405 = vpop.f32.mrb[0].mxu0
    %v1406 = vadd.f32 %v1338, %v1405
    %v1407 = vpop.f32.mrb[0].mxu0
    %1408 = vdwg.mxu0
    %v1409 = vld [vmem:[%s2 + $0x148] sm:$0xff]
    %v1410 = vld [vmem:[%s2 + $0x150] sm:$0xff]
    %v1411 = vld [vmem:[%s2 + $0x158] sm:$0xff]
    %v1412 = vld [vmem:[%s2 + $0x160] sm:$0xff]
    %v1413 = vld [vmem:[%s2 + $0x1d2] sm:$0x1]
    %v1414 = vlaneseq
    %v1415 = vshrl.u32 %v1414, 7
    %v1416 = vsub.s32 0, %v1415
    %v1417 = vrot.slane %v1413, %v1416
    %1418 = vmatprep.subr.mxu0 0.0
    %1419 = vmatpush1.msra.mxu0 %v1409
    %1420 = vmatprep.subr.mxu0 0.0
    %1421 = vmatpush1.msra.mxu0 %v1410
    %1422 = vmatprep.subr.mxu0 0.0
    %1423 = vmatpush1.msra.mxu0 %v1411
    %1424 = vmatprep.subr.mxu0 0.0
    %1425 = vmatpush1.msra.mxu0 %v1412
    %1426 = vmatprep.subr.mxu0 0.0
    %1427 = vmatpush1.msra.mxu0 0.0
    %1428 = vmatprep.subr.mxu0 0.0
    %1429 = vmatpush1.msra.mxu0 0.0
    %1430 = vmatprep.subr.mxu0 0.0
    %1431 = vmatpush1.msra.mxu0 0.0
    %1432 = vmatprep.subr.mxu0 0.0
    %1433 = vmatpush1.msra.mxu0 0.0
    %1434 = vmatprep.subr.mxu0 0.0
    %1435 = vmatpush1.msra.mxu0 0.0
    %1436 = vmatprep.subr.mxu0 0.0
    %1437 = vmatpush1.msra.mxu0 0.0
    %1438 = vmatprep.subr.mxu0 0.0
    %1439 = vmatpush1.msra.mxu0 0.0
    %1440 = vmatprep.subr.mxu0 0.0
    %1441 = vmatpush1.msra.mxu0 0.0
    %1442 = vmatprep.subr.mxu0 0.0
    %1443 = vmatpush1.msra.mxu0 0.0
    %1444 = vmatprep.subr.mxu0 0.0
    %1445 = vmatpush1.msra.mxu0 0.0
    %1446 = vmatprep.subr.mxu0 0.0
    %1447 = vmatpush1.msra.mxu0 0.0
    %1448 = vmatprep.subr.mxu0 0.0
    %1449 = vmatpush1.msra.mxu0 0.0
    %1450 = vmatprep.subr.mxu0 0.0
    %1451 = vmatpush1.msra.mxu0 0.0
    %1452 = vmatprep.subr.mxu0 0.0
    %1453 = vmatpush1.msra.mxu0 0.0
    %1454 = vmatprep.subr.mxu0 0.0
    %1455 = vmatpush1.msra.mxu0 0.0
    %1456 = vmatprep.subr.mxu0 0.0
    %1457 = vmatpush1.msra.mxu0 0.0
    %1458 = vmatprep.subr.mxu0 0.0
    %1459 = vmatpush1.msra.mxu0 0.0
    %1460 = vmatprep.subr.mxu0 0.0
    %1461 = vmatpush1.msra.mxu0 0.0
    %1462 = vmatprep.subr.mxu0 0.0
    %1463 = vmatpush1.msra.mxu0 0.0
    %1464 = vmatprep.subr.mxu0 0.0
    %1465 = vmatpush1.msra.mxu0 0.0
    %1466 = vmatprep.subr.mxu0 0.0
    %1467 = vmatpush1.msra.mxu0 0.0
    %1468 = vmatprep.subr.mxu0 0.0
    %1469 = vmatpush1.msra.mxu0 0.0
    %1470 = vmatprep.subr.mxu0 0.0
    %1471 = vmatpush1.msra.mxu0 0.0
    %1472 = vmatprep.subr.mxu0 0.0
    %1473 = vmatpush1.msra.mxu0 0.0
    %1474 = vmatprep.subr.mxu0 0.0
    %1475 = vmatpush1.msra.mxu0 0.0
    %1476 = vmatprep.subr.mxu0 0.0
    %1477 = vmatpush1.msra.mxu0 0.0
    %1478 = vmatprep.subr.mxu0 0.0
    %1479 = vmatpush1.msra.mxu0 0.0
    %1480 = vmatprep.subr.mxu0 0.0
    %1481 = vmatpush1.msra.mxu0 0.0
    %1482 = vmatprep.mubr.f32.mxu0 0.0
    %1483 = vmatmul.mubr.f32.gmra.mrb[0].mxu0 %v1258
    %v1484 = vpop.f32.mrb[0].mxu0
    %v1485 = vadd.f32 %v1417, %v1484
    %v1486 = vpop.f32.mrb[0].mxu0
    %1487 = vdwg.mxu0
    %v1489 = vsel %vm559, %v1327, 0
    %v1492 = vsel %vm559, %v1406, 0
    %1494 = vmatprep.subr.mxu0 0.0
    %1495 = vmatpush1.xpose.msra.mxu0 %v1492
    %1496 = vmatprep.subr.mxu0 0.0
    %1497 = vmatpush1.xpose.msra.mxu0 0.0
    %1498 = vmatprep.subr.mxu0 0.0
    %1499 = vmatpush1.xpose.msra.mxu0 0.0
    %1500 = vmatprep.subr.mxu0 0.0
    %1501 = vmatpush1.xpose.msra.mxu0 0.0
    %1502 = vmatprep.subr.mxu0 0.0
    %1503 = vmatpush1.xpose.msra.mxu0 0.0
    %1504 = vmatprep.subr.mxu0 0.0
    %1505 = vmatpush1.xpose.msra.mxu0 0.0
    %1506 = vmatprep.subr.mxu0 0.0
    %1507 = vmatpush1.xpose.msra.mxu0 0.0
    %1508 = vmatprep.subr.mxu0 0.0
    %1509 = vmatpush1.xpose.msra.mxu0 0.0
    %1510 = vmatprep.subr.mxu0 0.0
    %1511 = vmatpush1.xpose.msra.mxu0 0.0
    %1512 = vmatprep.subr.mxu0 0.0
    %1513 = vmatpush1.xpose.msra.mxu0 0.0
    %1514 = vmatprep.subr.mxu0 0.0
    %1515 = vmatpush1.xpose.msra.mxu0 0.0
    %1516 = vmatprep.subr.mxu0 0.0
    %1517 = vmatpush1.xpose.msra.mxu0 0.0
    %1518 = vmatprep.subr.mxu0 0.0
    %1519 = vmatpush1.xpose.msra.mxu0 0.0
    %1520 = vmatprep.subr.mxu0 0.0
    %1521 = vmatpush1.xpose.msra.mxu0 0.0
    %1522 = vmatprep.subr.mxu0 0.0
    %1523 = vmatpush1.xpose.msra.mxu0 0.0
    %1524 = vmatprep.subr.mxu0 0.0
    %1525 = vmatpush1.xpose.msra.mxu0 0.0
    %1526 = vmatprep.subr.mxu0 0.0
    %1527 = vmatpush1.xpose.msra.mxu0 0.0
    %1528 = vmatprep.subr.mxu0 0.0
    %1529 = vmatpush1.xpose.msra.mxu0 0.0
    %1530 = vmatprep.subr.mxu0 0.0
    %1531 = vmatpush1.xpose.msra.mxu0 0.0
    %1532 = vmatprep.subr.mxu0 0.0
    %1533 = vmatpush1.xpose.msra.mxu0 0.0
    %1534 = vmatprep.subr.mxu0 0.0
    %1535 = vmatpush1.xpose.msra.mxu0 0.0
    %1536 = vmatprep.subr.mxu0 0.0
    %1537 = vmatpush1.xpose.msra.mxu0 0.0
    %1538 = vmatprep.subr.mxu0 0.0
    %1539 = vmatpush1.xpose.msra.mxu0 0.0
    %1540 = vmatprep.subr.mxu0 0.0
    %1541 = vmatpush1.xpose.msra.mxu0 0.0
    %1542 = vmatprep.subr.mxu0 0.0
    %1543 = vmatpush1.xpose.msra.mxu0 0.0
    %1544 = vmatprep.subr.mxu0 0.0
    %1545 = vmatpush1.xpose.msra.mxu0 0.0
    %1546 = vmatprep.subr.mxu0 0.0
    %1547 = vmatpush1.xpose.msra.mxu0 0.0
    %1548 = vmatprep.subr.mxu0 0.0
    %1549 = vmatpush1.xpose.msra.mxu0 0.0
    %1550 = vmatprep.subr.mxu0 0.0
    %1551 = vmatpush1.xpose.msra.mxu0 0.0
    %1552 = vmatprep.subr.mxu0 0.0
    %1553 = vmatpush1.xpose.msra.mxu0 0.0
    %1554 = vmatprep.subr.mxu0 0.0
    %1555 = vmatpush1.xpose.msra.mxu0 0.0
    %1556 = vmatprep.subr.mxu0 0.0
    %1557 = vmatpush1.xpose.msra.mxu0 0.0
    %1558 = vmatprep.mubr.f32.mxu0 0.0
    %1559 = vmatmul.mubr.f32.gmra.mrb[0].mxu0 %v1489
    %v1560 = vpop.f32.mrb[0].mxu0
    %v1561 = vadd.f32 %v303, %v1560
    %v1562 = vpop.f32.mrb[0].mxu0
    %1563 = vdwg.mxu0
    %v1564 = vsel %vm636, %v1561, -inf
    %1565 = vmax.xlane.f32.xlu0 %v1564
    %v1566 = vpop.xlane.xlu0 %1565
    %v1567 = vsub.f32 %v1561, %v1566
    %v1568 = vmul.f32 %v1567, 1.442695
    %v1569 = vpow.pop %v1568
    %v1570 = vsel %vm636, %v1569, 0.0
    %1571 = vadd.xlane.f32.xlu0 %v1570
    %v1572 = vpop.xlane.xlu0 %1571
    %v1573 = vrcp.pop %v1572
    %v1574 = vmul.f32 %v1569, %v1573
    %v1576 = vsel %vm636, %v1574, 0
    %1578 = vmatprep.subr.mxu0 0.0
    %1579 = vmatpush1.msra.mxu0 %v1485
    %1580 = vmatprep.subr.mxu0 0.0
    %1581 = vmatpush1.msra.mxu0 0.0
    %1582 = vmatprep.subr.mxu0 0.0
    %1583 = vmatpush1.msra.mxu0 0.0
    %1584 = vmatprep.subr.mxu0 0.0
    %1585 = vmatpush1.msra.mxu0 0.0
    %1586 = vmatprep.subr.mxu0 0.0
    %1587 = vmatpush1.msra.mxu0 0.0
    %1588 = vmatprep.subr.mxu0 0.0
    %1589 = vmatpush1.msra.mxu0 0.0
    %1590 = vmatprep.subr.mxu0 0.0
    %1591 = vmatpush1.msra.mxu0 0.0
    %1592 = vmatprep.subr.mxu0 0.0
    %1593 = vmatpush1.msra.mxu0 0.0
    %1594 = vmatprep.subr.mxu0 0.0
    %1595 = vmatpush1.msra.mxu0 0.0
    %1596 = vmatprep.subr.mxu0 0.0
    %1597 = vmatpush1.msra.mxu0 0.0
    %1598 = vmatprep.subr.mxu0 0.0
    %1599 = vmatpush1.msra.mxu0 0.0
    %1600 = vmatprep.subr.mxu0 0.0
    %1601 = vmatpush1.msra.mxu0 0.0
    %1602 = vmatprep.subr.mxu0 0.0
    %1603 = vmatpush1.msra.mxu0 0.0
    %1604 = vmatprep.subr.mxu0 0.0
    %1605 = vmatpush1.msra.mxu0 0.0
    %1606 = vmatprep.subr.mxu0 0.0
    %1607 = vmatpush1.msra.mxu0 0.0
    %1608 = vmatprep.subr.mxu0 0.0
    %1609 = vmatpush1.msra.mxu0 0.0
    %1610 = vmatprep.subr.mxu0 0.0
    %1611 = vmatpush1.msra.mxu0 0.0
    %1612 = vmatprep.subr.mxu0 0.0
    %1613 = vmatpush1.msra.mxu0 0.0
    %1614 = vmatprep.subr.mxu0 0.0
    %1615 = vmatpush1.msra.mxu0 0.0
    %1616 = vmatprep.subr.mxu0 0.0
    %1617 = vmatpush1.msra.mxu0 0.0
    %1618 = vmatprep.subr.mxu0 0.0
    %1619 = vmatpush1.msra.mxu0 0.0
    %1620 = vmatprep.subr.mxu0 0.0
    %1621 = vmatpush1.msra.mxu0 0.0
    %1622 = vmatprep.subr.mxu0 0.0
    %1623 = vmatpush1.msra.mxu0 0.0
    %1624 = vmatprep.subr.mxu0 0.0
    %1625 = vmatpush1.msra.mxu0 0.0
    %1626 = vmatprep.subr.mxu0 0.0
    %1627 = vmatpush1.msra.mxu0 0.0
    %1628 = vmatprep.subr.mxu0 0.0
    %1629 = vmatpush1.msra.mxu0 0.0
    %1630 = vmatprep.subr.mxu0 0.0
    %1631 = vmatpush1.msra.mxu0 0.0
    %1632 = vmatprep.subr.mxu0 0.0
    %1633 = vmatpush1.msra.mxu0 0.0
    %1634 = vmatprep.subr.mxu0 0.0
    %1635 = vmatpush1.msra.mxu0 0.0
    %1636 = vmatprep.subr.mxu0 0.0
    %1637 = vmatpush1.msra.mxu0 0.0
    %1638 = vmatprep.subr.mxu0 0.0
    %1639 = vmatpush1.msra.mxu0 0.0
    %1640 = vmatprep.subr.mxu0 0.0
    %1641 = vmatpush1.msra.mxu0 0.0
    %1642 = vmatprep.mubr.f32.mxu0 0.0
    %1643 = vmatmul.mubr.f32.gmra.mrb[0].mxu0 %v1576
    %v1644 = vpop.f32.mrb[0].mxu0
    %v1645 = vadd.f32 0.0, %v1644
    %v1646 = vpop.f32.mrb[0].mxu0
    %1647 = vdwg.mxu0
    %v1648 = vld [vmem:[%s2 + $0x168] sm:$0xff]
    %v1649 = vld [vmem:[%s2 + $0x170] sm:$0xff]
    %1650 = vrot.lane.b32.xlu0 %v1327, 112
    %v1651 = vpop.permute.xlu0 %1650
    %1652 = vrot.lane.b32.xlu0 %v1406, 112
    %v1653 = vpop.permute.xlu0 %1652
    %v1654 = vsel %vm559, %v1651, 0
    %v1656 = vsel %vm559, %v1653, 0
    %1658 = vmatprep.subr.mxu0 0.0
    %1659 = vmatpush1.xpose.msra.mxu0 %v1656
    %1660 = vmatprep.subr.mxu0 0.0
    %1661 = vmatpush1.xpose.msra.mxu0 0.0
    %1662 = vmatprep.subr.mxu0 0.0
    %1663 = vmatpush1.xpose.msra.mxu0 0.0
    %1664 = vmatprep.subr.mxu0 0.0
    %1665 = vmatpush1.xpose.msra.mxu0 0.0
    %1666 = vmatprep.subr.mxu0 0.0
    %1667 = vmatpush1.xpose.msra.mxu0 0.0
    %1668 = vmatprep.subr.mxu0 0.0
    %1669 = vmatpush1.xpose.msra.mxu0 0.0
    %1670 = vmatprep.subr.mxu0 0.0
    %1671 = vmatpush1.xpose.msra.mxu0 0.0
    %1672 = vmatprep.subr.mxu0 0.0
    %1673 = vmatpush1.xpose.msra.mxu0 0.0
    %1674 = vmatprep.subr.mxu0 0.0
    %1675 = vmatpush1.xpose.msra.mxu0 0.0
    %1676 = vmatprep.subr.mxu0 0.0
    %1677 = vmatpush1.xpose.msra.mxu0 0.0
    %1678 = vmatprep.subr.mxu0 0.0
    %1679 = vmatpush1.xpose.msra.mxu0 0.0
    %1680 = vmatprep.subr.mxu0 0.0
    %1681 = vmatpush1.xpose.msra.mxu0 0.0
    %1682 = vmatprep.subr.mxu0 0.0
    %1683 = vmatpush1.xpose.msra.mxu0 0.0
    %1684 = vmatprep.subr.mxu0 0.0
    %1685 = vmatpush1.xpose.msra.mxu0 0.0
    %1686 = vmatprep.subr.mxu0 0.0
    %1687 = vmatpush1.xpose.msra.mxu0 0.0
    %1688 = vmatprep.subr.mxu0 0.0
    %1689 = vmatpush1.xpose.msra.mxu0 0.0
    %1690 = vmatprep.subr.mxu0 0.0
    %1691 = vmatpush1.xpose.msra.mxu0 0.0
    %1692 = vmatprep.subr.mxu0 0.0
    %1693 = vmatpush1.xpose.msra.mxu0 0.0
    %1694 = vmatprep.subr.mxu0 0.0
    %1695 = vmatpush1.xpose.msra.mxu0 0.0
    %1696 = vmatprep.subr.mxu0 0.0
    %1697 = vmatpush1.xpose.msra.mxu0 0.0
    %1698 = vmatprep.subr.mxu0 0.0
    %1699 = vmatpush1.xpose.msra.mxu0 0.0
    %1700 = vmatprep.subr.mxu0 0.0
    %1701 = vmatpush1.xpose.msra.mxu0 0.0
    %1702 = vmatprep.subr.mxu0 0.0
    %1703 = vmatpush1.xpose.msra.mxu0 0.0
    %1704 = vmatprep.subr.mxu0 0.0
    %1705 = vmatpush1.xpose.msra.mxu0 0.0
    %1706 = vmatprep.subr.mxu0 0.0
    %1707 = vmatpush1.xpose.msra.mxu0 0.0
    %1708 = vmatprep.subr.mxu0 0.0
    %1709 = vmatpush1.xpose.msra.mxu0 0.0
    %1710 = vmatprep.subr.mxu0 0.0
    %1711 = vmatpush1.xpose.msra.mxu0 0.0
    %1712 = vmatprep.subr.mxu0 0.0
    %1713 = vmatpush1.xpose.msra.mxu0 0.0
    %1714 = vmatprep.subr.mxu0 0.0
    %1715 = vmatpush1.xpose.msra.mxu0 0.0
    %1716 = vmatprep.subr.mxu0 0.0
    %1717 = vmatpush1.xpose.msra.mxu0 0.0
    %1718 = vmatprep.subr.mxu0 0.0
    %1719 = vmatpush1.xpose.msra.mxu0 0.0
    %1720 = vmatprep.subr.mxu0 0.0
    %1721 = vmatpush1.xpose.msra.mxu0 0.0
    %1722 = vmatprep.mubr.f32.mxu0 0.0
    %1723 = vmatmul.mubr.f32.gmra.mrb[0].mxu0 %v1654
    %v1724 = vpop.f32.mrb[0].mxu0
    %v1725 = vadd.f32 %v303, %v1724
    %v1726 = vpop.f32.mrb[0].mxu0
    %1727 = vdwg.mxu0
    %v1728 = vsel %vm636, %v1725, -inf
    %1729 = vmax.xlane.f32.xlu0 %v1728
    %v1730 = vpop.xlane.xlu0 %1729
    %v1731 = vsub.f32 %v1725, %v1730
    %v1732 = vmul.f32 %v1731, 1.442695
    %v1733 = vpow.pop %v1732
    %v1734 = vsel %vm636, %v1733, 0.0
    %1735 = vadd.xlane.f32.xlu0 %v1734
    %v1736 = vpop.xlane.xlu0 %1735
    %v1737 = vrcp.pop %v1736
    %v1738 = vmul.f32 %v1733, %v1737
    %1740 = vrot.lane.b32.xlu0 %v1485, 112
    %v1741 = vpop.permute.xlu0 %1740
    %v1744 = vsel %vm636, %v1738, 0
    %1746 = vmatprep.subr.mxu0 0.0
    %1747 = vmatpush1.msra.mxu0 %v1741
    %1748 = vmatprep.subr.mxu0 0.0
    %1749 = vmatpush1.msra.mxu0 0.0
    %1750 = vmatprep.subr.mxu0 0.0
    %1751 = vmatpush1.msra.mxu0 0.0
    %1752 = vmatprep.subr.mxu0 0.0
    %1753 = vmatpush1.msra.mxu0 0.0
    %1754 = vmatprep.subr.mxu0 0.0
    %1755 = vmatpush1.msra.mxu0 0.0
    %1756 = vmatprep.subr.mxu0 0.0
    %1757 = vmatpush1.msra.mxu0 0.0
    %1758 = vmatprep.subr.mxu0 0.0
    %1759 = vmatpush1.msra.mxu0 0.0
    %1760 = vmatprep.subr.mxu0 0.0
    %1761 = vmatpush1.msra.mxu0 0.0
    %1762 = vmatprep.subr.mxu0 0.0
    %1763 = vmatpush1.msra.mxu0 0.0
    %1764 = vmatprep.subr.mxu0 0.0
    %1765 = vmatpush1.msra.mxu0 0.0
    %1766 = vmatprep.subr.mxu0 0.0
    %1767 = vmatpush1.msra.mxu0 0.0
    %1768 = vmatprep.subr.mxu0 0.0
    %1769 = vmatpush1.msra.mxu0 0.0
    %1770 = vmatprep.subr.mxu0 0.0
    %1771 = vmatpush1.msra.mxu0 0.0
    %1772 = vmatprep.subr.mxu0 0.0
    %1773 = vmatpush1.msra.mxu0 0.0
    %1774 = vmatprep.subr.mxu0 0.0
    %1775 = vmatpush1.msra.mxu0 0.0
    %1776 = vmatprep.subr.mxu0 0.0
    %1777 = vmatpush1.msra.mxu0 0.0
    %1778 = vmatprep.subr.mxu0 0.0
    %1779 = vmatpush1.msra.mxu0 0.0
    %1780 = vmatprep.subr.mxu0 0.0
    %1781 = vmatpush1.msra.mxu0 0.0
    %1782 = vmatprep.subr.mxu0 0.0
    %1783 = vmatpush1.msra.mxu0 0.0
    %1784 = vmatprep.subr.mxu0 0.0
    %1785 = vmatpush1.msra.mxu0 0.0
    %1786 = vmatprep.subr.mxu0 0.0
    %1787 = vmatpush1.msra.mxu0 0.0
    %1788 = vmatprep.subr.mxu0 0.0
    %1789 = vmatpush1.msra.mxu0 0.0
    %1790 = vmatprep.subr.mxu0 0.0
    %1791 = vmatpush1.msra.mxu0 0.0
    %1792 = vmatprep.subr.mxu0 0.0
    %1793 = vmatpush1.msra.mxu0 0.0
    %1794 = vmatprep.subr.mxu0 0.0
    %1795 = vmatpush1.msra.mxu0 0.0
    %1796 = vmatprep.subr.mxu0 0.0
    %1797 = vmatpush1.msra.mxu0 0.0
    %1798 = vmatprep.subr.mxu0 0.0
    %1799 = vmatpush1.msra.mxu0 0.0
    %1800 = vmatprep.subr.mxu0 0.0
    %1801 = vmatpush1.msra.mxu0 0.0
    %1802 = vmatprep.subr.mxu0 0.0
    %1803 = vmatpush1.msra.mxu0 0.0
    %1804 = vmatprep.subr.mxu0 0.0
    %1805 = vmatpush1.msra.mxu0 0.0
    %1806 = vmatprep.subr.mxu0 0.0
    %1807 = vmatpush1.msra.mxu0 0.0
    %1808 = vmatprep.subr.mxu0 0.0
    %1809 = vmatpush1.msra.mxu0 0.0
    %1810 = vmatprep.mubr.f32.mxu0 0.0
    %1811 = vmatmul.mubr.f32.gmra.mrb[0].mxu0 %v1744
    %v1812 = vpop.f32.mrb[0].mxu0
    %v1813 = vadd.f32 0.0, %v1812
    %v1814 = vpop.f32.mrb[0].mxu0
    %1815 = vdwg.mxu0
    %v1816 = vld [vmem:[%s2 + $0x178] sm:$0xff]
    %v1817 = vld [vmem:[%s2 + $0x180] sm:$0xff]
    %v1819 = vsel %vm559, %v1813, 0
    %1821 = vmatprep.subr.mxu0 0.0
    %1822 = vmatpush1.msra.mxu0 %v1816
    %1823 = vmatprep.subr.mxu0 0.0
    %1824 = vmatpush1.msra.mxu0 %v1817
    %1825 = vmatprep.subr.mxu0 0.0
    %1826 = vmatpush1.msra.mxu0 0.0
    %1827 = vmatprep.subr.mxu0 0.0
    %1828 = vmatpush1.msra.mxu0 0.0
    %1829 = vmatprep.subr.mxu0 0.0
    %1830 = vmatpush1.msra.mxu0 0.0
    %1831 = vmatprep.subr.mxu0 0.0
    %1832 = vmatpush1.msra.mxu0 0.0
    %1833 = vmatprep.subr.mxu0 0.0
    %1834 = vmatpush1.msra.mxu0 0.0
    %1835 = vmatprep.subr.mxu0 0.0
    %1836 = vmatpush1.msra.mxu0 0.0
    %1837 = vmatprep.subr.mxu0 0.0
    %1838 = vmatpush1.msra.mxu0 0.0
    %1839 = vmatprep.subr.mxu0 0.0
    %1840 = vmatpush1.msra.mxu0 0.0
    %1841 = vmatprep.subr.mxu0 0.0
    %1842 = vmatpush1.msra.mxu0 0.0
    %1843 = vmatprep.subr.mxu0 0.0
    %1844 = vmatpush1.msra.mxu0 0.0
    %1845 = vmatprep.subr.mxu0 0.0
    %1846 = vmatpush1.msra.mxu0 0.0
    %1847 = vmatprep.subr.mxu0 0.0
    %1848 = vmatpush1.msra.mxu0 0.0
    %1849 = vmatprep.subr.mxu0 0.0
    %1850 = vmatpush1.msra.mxu0 0.0
    %1851 = vmatprep.subr.mxu0 0.0
    %1852 = vmatpush1.msra.mxu0 0.0
    %1853 = vmatprep.subr.mxu0 0.0
    %1854 = vmatpush1.msra.mxu0 0.0
    %1855 = vmatprep.subr.mxu0 0.0
    %1856 = vmatpush1.msra.mxu0 0.0
    %1857 = vmatprep.subr.mxu0 0.0
    %1858 = vmatpush1.msra.mxu0 0.0
    %1859 = vmatprep.subr.mxu0 0.0
    %1860 = vmatpush1.msra.mxu0 0.0
    %1861 = vmatprep.subr.mxu0 0.0
    %1862 = vmatpush1.msra.mxu0 0.0
    %1863 = vmatprep.subr.mxu0 0.0
    %1864 = vmatpush1.msra.mxu0 0.0
    %1865 = vmatprep.subr.mxu0 0.0
    %1866 = vmatpush1.msra.mxu0 0.0
    %1867 = vmatprep.subr.mxu0 0.0
    %1868 = vmatpush1.msra.mxu0 0.0
    %1869 = vmatprep.subr.mxu0 0.0
    %1870 = vmatpush1.msra.mxu0 0.0
    %1871 = vmatprep.subr.mxu0 0.0
    %1872 = vmatpush1.msra.mxu0 0.0
    %1873 = vmatprep.subr.mxu0 0.0
    %1874 = vmatpush1.msra.mxu0 0.0
    %1875 = vmatprep.subr.mxu0 0.0
    %1876 = vmatpush1.msra.mxu0 0.0
    %1877 = vmatprep.subr.mxu0 0.0
    %1878 = vmatpush1.msra.mxu0 0.0
    %1879 = vmatprep.subr.mxu0 0.0
    %1880 = vmatpush1.msra.mxu0 0.0
    %1881 = vmatprep.subr.mxu0 0.0
    %1882 = vmatpush1.msra.mxu0 0.0
    %1883 = vmatprep.subr.mxu0 0.0
    %1884 = vmatpush1.msra.mxu0 0.0
    %1885 = vmatprep.mubr.f32.mxu0 0.0
    %1886 = vmatmul.mubr.f32.gmra.mrb[0].mxu0 %v1819
    %v1887 = vpop.f32.mrb[0].mxu0
    %v1888 = vadd.f32 0.0, %v1887
    %v1889 = vpop.f32.mrb[0].mxu0
    %1890 = vdwg.mxu0
    %v1892 = vsel %vm559, %v1645, 0
    %1894 = vmatprep.subr.mxu0 0.0
    %1895 = vmatpush1.msra.mxu0 %v1648
    %1896 = vmatprep.subr.mxu0 0.0
    %1897 = vmatpush1.msra.mxu0 %v1649
    %1898 = vmatprep.subr.mxu0 0.0
    %1899 = vmatpush1.msra.mxu0 0.0
    %1900 = vmatprep.subr.mxu0 0.0
    %1901 = vmatpush1.msra.mxu0 0.0
    %1902 = vmatprep.subr.mxu0 0.0
    %1903 = vmatpush1.msra.mxu0 0.0
    %1904 = vmatprep.subr.mxu0 0.0
    %1905 = vmatpush1.msra.mxu0 0.0
    %1906 = vmatprep.subr.mxu0 0.0
    %1907 = vmatpush1.msra.mxu0 0.0
    %1908 = vmatprep.subr.mxu0 0.0
    %1909 = vmatpush1.msra.mxu0 0.0
    %1910 = vmatprep.subr.mxu0 0.0
    %1911 = vmatpush1.msra.mxu0 0.0
    %1912 = vmatprep.subr.mxu0 0.0
    %1913 = vmatpush1.msra.mxu0 0.0
    %1914 = vmatprep.subr.mxu0 0.0
    %1915 = vmatpush1.msra.mxu0 0.0
    %1916 = vmatprep.subr.mxu0 0.0
    %1917 = vmatpush1.msra.mxu0 0.0
    %1918 = vmatprep.subr.mxu0 0.0
    %1919 = vmatpush1.msra.mxu0 0.0
    %1920 = vmatprep.subr.mxu0 0.0
    %1921 = vmatpush1.msra.mxu0 0.0
    %1922 = vmatprep.subr.mxu0 0.0
    %1923 = vmatpush1.msra.mxu0 0.0
    %1924 = vmatprep.subr.mxu0 0.0
    %1925 = vmatpush1.msra.mxu0 0.0
    %1926 = vmatprep.subr.mxu0 0.0
    %1927 = vmatpush1.msra.mxu0 0.0
    %1928 = vmatprep.subr.mxu0 0.0
    %1929 = vmatpush1.msra.mxu0 0.0
    %1930 = vmatprep.subr.mxu0 0.0
    %1931 = vmatpush1.msra.mxu0 0.0
    %1932 = vmatprep.subr.mxu0 0.0
    %1933 = vmatpush1.msra.mxu0 0.0
    %1934 = vmatprep.subr.mxu0 0.0
    %1935 = vmatpush1.msra.mxu0 0.0
    %1936 = vmatprep.subr.mxu0 0.0
    %1937 = vmatpush1.msra.mxu0 0.0
    %1938 = vmatprep.subr.mxu0 0.0
    %1939 = vmatpush1.msra.mxu0 0.0
    %1940 = vmatprep.subr.mxu0 0.0
    %1941 = vmatpush1.msra.mxu0 0.0
    %1942 = vmatprep.subr.mxu0 0.0
    %1943 = vmatpush1.msra.mxu0 0.0
    %1944 = vmatprep.subr.mxu0 0.0
    %1945 = vmatpush1.msra.mxu0 0.0
    %1946 = vmatprep.subr.mxu0 0.0
    %1947 = vmatpush1.msra.mxu0 0.0
    %1948 = vmatprep.subr.mxu0 0.0
    %1949 = vmatpush1.msra.mxu0 0.0
    %1950 = vmatprep.subr.mxu0 0.0
    %1951 = vmatpush1.msra.mxu0 0.0
    %1952 = vmatprep.subr.mxu0 0.0
    %1953 = vmatpush1.msra.mxu0 0.0
    %1954 = vmatprep.subr.mxu0 0.0
    %1955 = vmatpush1.msra.mxu0 0.0
    %1956 = vmatprep.subr.mxu0 0.0
    %1957 = vmatpush1.msra.mxu0 0.0
    %1958 = vmatprep.mubr.f32.mxu0 0.0
    %1959 = vmatmul.mubr.f32.gmra.mrb[0].mxu0 %v1892
    %v1960 = vpop.f32.mrb[0].mxu0
    %v1961 = vadd.f32 %v1888, %v1960
    %v1962 = vpop.f32.mrb[0].mxu0
    %1963 = vdwg.mxu0
    %v1964 = vadd.f32 %v1234, %v1961
    %v1965 = vld [vmem:[%s2 + $0x1d3] sm:$0x1]
    %v1966 = vlaneseq
    %v1967 = vshrl.u32 %v1966, 7
    %v1968 = vsub.s32 0, %v1967
    %v1969 = vrot.slane %v1965, %v1968
    %v1970 = vadd.f32 %v1964, %v1969
    %v1971 = vsel %vm304, %v1970, 0.0
    %1972 = vadd.xlane.f32.xlu0 %v1971
    %v1973 = vpop.xlane.xlu0 %1972
    %v1974 = vmul.f32 %v1973, %v308
    %v1975 = vsub.f32 %v1970, %v1974
    %v1976 = vmul.f32 %v1975, %v1975
    %v1977 = vsel %vm304, %v1976, 0.0
    %1978 = vadd.xlane.f32.xlu0 %v1977
    %v1979 = vpop.xlane.xlu0 %1978
    %v1980 = vmul.f32 %v1979, %v308
    %v1981 = vadd.f32 %v1980, 1e-05
    %v1982 = vrsqrt.pop %v1981
    %v1983 = vmul.f32 %v1975, %v1982
    %v1984 = vld [vmem:[%s3 + $0x28] sm:$0xff]
    %v1985 = vld [vmem:[%s3 + $0x30] sm:$0xff]
    %v1986 = vld [vmem:[%s3 + $0x38] sm:$0xff]
    %v1987 = vld [vmem:[%s3 + $0x40] sm:$0xff]
    %v1988 = vld [vmem:[%s3 + $0x48] sm:$0x1]
    %v1989 = vlaneseq
    %v1990 = vshrl.u32 %v1989, 7
    %v1991 = vsub.s32 0, %v1990
    %v1992 = vrot.slane %v1988, %v1991
    %v1994 = vsel %vm304, %v1983, 0
    %1996 = vmatprep.subr.mxu0 0.0
    %1997 = vmatpush1.msra.mxu0 %v1984
    %1998 = vmatprep.subr.mxu0 0.0
    %1999 = vmatpush1.msra.mxu0 %v1985
    %2000 = vmatprep.subr.mxu0 0.0
    %2001 = vmatpush1.msra.mxu0 %v1986
    %2002 = vmatprep.subr.mxu0 0.0
    %2003 = vmatpush1.msra.mxu0 %v1987
    %2004 = vmatprep.subr.mxu0 0.0
    %2005 = vmatpush1.msra.mxu0 0.0
    %2006 = vmatprep.subr.mxu0 0.0
    %2007 = vmatpush1.msra.mxu0 0.0
    %2008 = vmatprep.subr.mxu0 0.0
    %2009 = vmatpush1.msra.mxu0 0.0
    %2010 = vmatprep.subr.mxu0 0.0
    %2011 = vmatpush1.msra.mxu0 0.0
    %2012 = vmatprep.subr.mxu0 0.0
    %2013 = vmatpush1.msra.mxu0 0.0
    %2014 = vmatprep.subr.mxu0 0.0
    %2015 = vmatpush1.msra.mxu0 0.0
    %2016 = vmatprep.subr.mxu0 0.0
    %2017 = vmatpush1.msra.mxu0 0.0
    %2018 = vmatprep.subr.mxu0 0.0
    %2019 = vmatpush1.msra.mxu0 0.0
    %2020 = vmatprep.subr.mxu0 0.0
    %2021 = vmatpush1.msra.mxu0 0.0
    %2022 = vmatprep.subr.mxu0 0.0
    %2023 = vmatpush1.msra.mxu0 0.0
    %2024 = vmatprep.subr.mxu0 0.0
    %2025 = vmatpush1.msra.mxu0 0.0
    %2026 = vmatprep.subr.mxu0 0.0
    %2027 = vmatpush1.msra.mxu0 0.0
    %2028 = vmatprep.subr.mxu0 0.0
    %2029 = vmatpush1.msra.mxu0 0.0
    %2030 = vmatprep.subr.mxu0 0.0
    %2031 = vmatpush1.msra.mxu0 0.0
    %2032 = vmatprep.subr.mxu0 0.0
    %2033 = vmatpush1.msra.mxu0 0.0
    %2034 = vmatprep.subr.mxu0 0.0
    %2035 = vmatpush1.msra.mxu0 0.0
    %2036 = vmatprep.subr.mxu0 0.0
    %2037 = vmatpush1.msra.mxu0 0.0
    %2038 = vmatprep.subr.mxu0 0.0
    %2039 = vmatpush1.msra.mxu0 0.0
    %2040 = vmatprep.subr.mxu0 0.0
    %2041 = vmatpush1.msra.mxu0 0.0
    %2042 = vmatprep.subr.mxu0 0.0
    %2043 = vmatpush1.msra.mxu0 0.0
    %2044 = vmatprep.subr.mxu0 0.0
    %2045 = vmatpush1.msra.mxu0 0.0
    %2046 = vmatprep.subr.mxu0 0.0
    %2047 = vmatpush1.msra.mxu0 0.0
    %2048 = vmatprep.subr.mxu0 0.0
    %2049 = vmatpush1.msra.mxu0 0.0
    %2050 = vmatprep.subr.mxu0 0.0
    %2051 = vmatpush1.msra.mxu0 0.0
    %2052 = vmatprep.subr.mxu0 0.0
    %2053 = vmatpush1.msra.mxu0 0.0
    %2054 = vmatprep.subr.mxu0 0.0
    %2055 = vmatpush1.msra.mxu0 0.0
    %2056 = vmatprep.subr.mxu0 0.0
    %2057 = vmatpush1.msra.mxu0 0.0
    %2058 = vmatprep.subr.mxu0 0.0
    %2059 = vmatpush1.msra.mxu0 0.0
    %2060 = vmatprep.mubr.f32.mxu0 0.0
    %2061 = vmatmul.mubr.f32.gmra.mrb[0].mxu0 %v1994
    %v2062 = vpop.f32.mrb[0].mxu0
    %v2063 = vadd.f32 %v1992, %v2062
    %v2064 = vpop.f32.mrb[0].mxu0
    %2065 = vdwg.mxu0
    %v2066 = vmul.f32 %v2063, 1.702
    %v2067 = vxor.u32 %v2066, 2147483648
    %v2068 = vmul.f32 %v2067, 1.442695
    %v2069 = vpow.pop %v2068
    %v2070 = vadd.f32 %v2069, 1.0
    %v2071 = vrcp.pop %v2070
    %v2072 = vmul.f32 1.0, %v2071
    %v2073 = vmul.f32 %v2063, %v2072
    %v2074 = vld [vmem:[%s2 + $0x188] sm:$0xff]
    %v2075 = vld [vmem:[%s2 + $0x190] sm:$0xff]
    %v2076 = vld [vmem:[%s2 + $0x198] sm:$0xff]
    %v2077 = vld [vmem:[%s2 + $0x1a0] sm:$0xff]
    %v2078 = vld [vmem:[%s2 + $0x1a8] sm:$0xff]
    %v2079 = vld [vmem:[%s2 + $0x1b0] sm:$0xff]
    %v2080 = vld [vmem:[%s2 + $0x1b8] sm:$0xff]
    %v2081 = vld [vmem:[%s2 + $0x1c0] sm:$0xff]
    %v2083 = vsel %vm139, %v2073, 0
    %2085 = vmatprep.subr.mxu0 0.0
    %2086 = vmatpush1.msra.mxu0 %v2074
    %2087 = vmatprep.subr.mxu0 0.0
    %2088 = vmatpush1.msra.mxu0 %v2075
    %2089 = vmatprep.subr.mxu0 0.0
    %2090 = vmatpush1.msra.mxu0 %v2076
    %2091 = vmatprep.subr.mxu0 0.0
    %2092 = vmatpush1.msra.mxu0 %v2077
    %2093 = vmatprep.subr.mxu0 0.0
    %2094 = vmatpush1.msra.mxu0 %v2078
    %2095 = vmatprep.subr.mxu0 0.0
    %2096 = vmatpush1.msra.mxu0 %v2079
    %2097 = vmatprep.subr.mxu0 0.0
    %2098 = vmatpush1.msra.mxu0 %v2080
    %2099 = vmatprep.subr.mxu0 0.0
    %2100 = vmatpush1.msra.mxu0 %v2081
    %2101 = vmatprep.subr.mxu0 0.0
    %2102 = vmatpush1.msra.mxu0 0.0
    %2103 = vmatprep.subr.mxu0 0.0
    %2104 = vmatpush1.msra.mxu0 0.0
    %2105 = vmatprep.subr.mxu0 0.0
    %2106 = vmatpush1.msra.mxu0 0.0
    %2107 = vmatprep.subr.mxu0 0.0
    %2108 = vmatpush1.msra.mxu0 0.0
    %2109 = vmatprep.subr.mxu0 0.0
    %2110 = vmatpush1.msra.mxu0 0.0
    %2111 = vmatprep.subr.mxu0 0.0
    %2112 = vmatpush1.msra.mxu0 0.0
    %2113 = vmatprep.subr.mxu0 0.0
    %2114 = vmatpush1.msra.mxu0 0.0
    %2115 = vmatprep.subr.mxu0 0.0
    %2116 = vmatpush1.msra.mxu0 0.0
    %2117 = vmatprep.subr.mxu0 0.0
    %2118 = vmatpush1.msra.mxu0 0.0
    %2119 = vmatprep.subr.mxu0 0.0
    %2120 = vmatpush1.msra.mxu0 0.0
    %2121 = vmatprep.subr.mxu0 0.0
    %2122 = vmatpush1.msra.mxu0 0.0
    %2123 = vmatprep.subr.mxu0 0.0
    %2124 = vmatpush1.msra.mxu0 0.0
    %2125 = vmatprep.subr.mxu0 0.0
    %2126 = vmatpush1.msra.mxu0 0.0
    %2127 = vmatprep.subr.mxu0 0.0
    %2128 = vmatpush1.msra.mxu0 0.0
    %2129 = vmatprep.subr.mxu0 0.0
    %2130 = vmatpush1.msra.mxu0 0.0
    %2131 = vmatprep.subr.mxu0 0.0
    %2132 = vmatpush1.msra.mxu0 0.0
    %2133 = vmatprep.subr.mxu0 0.0
    %2134 = vmatpush1.msra.mxu0 0.0
    %2135 = vmatprep.subr.mxu0 0.0
    %2136 = vmatpush1.msra.mxu0 0.0
    %2137 = vmatprep.subr.mxu0 0.0
    %2138 = vmatpush1.msra.mxu0 0.0
    %2139 = vmatprep.subr.mxu0 0.0
    %2140 = vmatpush1.msra.mxu0 0.0
    %2141 = vmatprep.subr.mxu0 0.0
    %2142 = vmatpush1.msra.mxu0 0.0
    %2143 = vmatprep.subr.mxu0 0.0
    %2144 = vmatpush1.msra.mxu0 0.0
    %2145 = vmatprep.subr.mxu0 0.0
    %2146 = vmatpush1.msra.mxu0 0.0
    %2147 = vmatprep.subr.mxu0 0.0
    %2148 = vmatpush1.msra.mxu0 0.0
    %2149 = vmatprep.mubr.f32.mxu0 0.0
    %2150 = vmatmul.mubr.f32.gmra.mrb[0].mxu0 %v2083
    %v2151 = vpop.f32.mrb[0].mxu0
    %v2152 = vadd.f32 0.0, %v2151
    %v2153 = vpop.f32.mrb[0].mxu0
    %2154 = vdwg.mxu0
    %v2155 = vadd.f32 %v1970, %v2152
    %v2156 = vld [vmem:[%s2 + $0x1d4] sm:$0x1]
    %v2157 = vlaneseq
    %v2158 = vshrl.u32 %v2157, 7
    %v2159 = vsub.s32 0, %v2158
    %v2160 = vrot.slane %v2156, %v2159
    %v2161 = vadd.f32 %v2155, %v2160
    %v2162 = vsel %vm304, %v2161, 0.0
    %2163 = vadd.xlane.f32.xlu0 %v2162
    %v2164 = vpop.xlane.xlu0 %2163
    %v2165 = vmul.f32 %v2164, %v308
    %v2166 = vsub.f32 %v2161, %v2165
    %v2167 = vmul.f32 %v2166, %v2166
    %v2168 = vsel %vm304, %v2167, 0.0
    %2169 = vadd.xlane.f32.xlu0 %v2168
    %v2170 = vpop.xlane.xlu0 %2169
    %v2171 = vmul.f32 %v2170, %v308
    %v2172 = vadd.f32 %v2171, 1e-05
    %v2173 = vrsqrt.pop %v2172
    %v2174 = vmul.f32 %v2166, %v2173
    %v2175 = vld [vmem:[%s2 + $0x1d8] sm:$0x1]
    %v2176 = vlaneseq
    %v2177 = vshrl.u32 %v2176, 7
    %v2178 = vsub.s32 0, %v2177
    %v2179 = vrot.slane %v2175, %v2178
    %v2180 = vmul.f32 %v2174, %v2179
    %v2181 = vld [vmem:[%s2 + $0x1d9] sm:$0x1]
    %v2182 = vlaneseq
    %v2183 = vshrl.u32 %v2182, 7
    %v2184 = vsub.s32 0, %v2183
    %v2185 = vrot.slane %v2181, %v2184
    %v2186 = vadd.f32 %v2180, %v2185
    %2187 = vst.msk [vmem:[#allocation5] sm:$0xff] %vm304, %v2186
    %v2188 = vstv %s99
    %vm2189 = vcmp.eq.s32.totalorder %v101, %v2188
    %v2190 = vsel %vm2189, %v2186, 0.0
    %v2191 = vsel %vm304, %v2190, 0.0
    %v2192 = vrot.slane %v2191, 4
    %v2193 = vadd.f32 %v2191, %v2192
    %v2194 = vrot.slane %v2193, 2
    %v2195 = vadd.f32 %v2193, %v2194
    %v2196 = vrot.slane %v2195, 1
    %v2197 = vadd.f32 %v2195, %v2196
    %vm2198 = vcmask 253952
    %2199 = vst.msk [vmem:[#allocation6] sm:$0x1] %vm2198, %v2197
    // Predicated region
    $region22: #{weight_vector_forward.1} parent=1 // pred_check
      _
    $region23: #{weight_vector_forward.1} parent=1 // pred_check_branch
      %2201 = sbr.rel (0) target = $region25
    $region24: #{weight_vector_forward.1} parent=1 // pred_region
      %s2203 = ssub.s32 128, 128
      %2204 = vsyncadd [#allocation3], %s2203
      %s2206 = sshll.u32 [#allocation5], 4
      %s2207 = int_to_ptr.vmem [resolvable:$true] %s2206
      %2209 = dma.vmem_to_hbm [thread:$0]  %s2207, 128, %s4, [#allocation3]
    $region25: #{weight_vector_forward.1} parent=1 // pred_fallthru
      _
    // Predicated region
    $region26: #{weight_vector_forward.1} parent=1 // pred_check
      _
    $region27: #{weight_vector_forward.1} parent=1 // pred_check_branch
      %2211 = sbr.rel (0) target = $region29
    $region28: #{weight_vector_forward.1} parent=1 // pred_region
      %s2213 = ssub.s32 16, 16
      %2214 = vsyncadd [#allocation7], %s2213
      %s2216 = sshll.u32 [#allocation6], 4
      %s2217 = int_to_ptr.vmem [resolvable:$true] %s2216
      %2219 = dma.vmem_to_hbm [thread:$0]  %s2217, 16, %s5, [#allocation7]
    $region29: #{weight_vector_forward.1} parent=1 // pred_fallthru
      _
    // Predicated region
    $region30: #{weight_vector_forward.1} parent=1 // pred_check
      _
    $region31: #{weight_vector_forward.1} parent=1 // pred_check_branch
      %2221 = sbr.rel (0) target = $region33
    $region32: #{weight_vector_forward.1} parent=1 // pred_region
      %2222 = dma.done [#allocation3], 128
    $region33: #{weight_vector_forward.1} parent=1 // pred_fallthru
      _
    // Predicated region
    $region34: #{weight_vector_forward.1} parent=1 // pred_check
      _
    $region35: #{weight_vector_forward.1} parent=1 // pred_check_branch
      %2224 = sbr.rel (0) target = $region37
    $region36: #{weight_vector_forward.1} parent=1 // pred_region
      %2225 = dma.done [#allocation7], 16
    $region37: #{weight_vector_forward.1} parent=1 // pred_fallthru
      _
    %2226 = vsyncpa [#allocation3], 1
    %2227 = vsyncpa [#allocation7], 1
    %2228 = vsyncpa [#allocation4], 1

</llo_original>
